<compile_context>
chip_gen: v5e
topology: v5e:2x2
jax: 0.10.0
libtpu: 0.0.40
codegen_flags: <defaults>
</compile_context>

<pallas_src>
import functools

import jax
import jax.numpy as jnp
from jax.experimental import pallas as pl
from jax.experimental.pallas import tpu as pltpu


def _round_up(x, m):
    return ((x + m - 1) // m) * m


def _attentive_pooling_kernel(qcol_ref, acol_ref, wconv_ref, bconv_ref,
                              watt_ref, out_ref):
    """One grid step == one block of TB batch elements.

    qcol_ref : (TB, Lq, KEp)  im2col'ed question embeddings (compute dtype)
    acol_ref : (TB, La, KEp)  im2col'ed answer embeddings   (compute dtype)
    wconv_ref: (KEp, Cp)      conv1d weight, tap-major im2col layout
    bconv_ref: (1, Cp)        conv1d bias (f32)
    watt_ref : (Cp, Cp)       attention bilinear weight
    out_ref  : (1, 1, TB)     cosine similarities (lane-dense row per block)
    """
    TB, Lq, KEp = qcol_ref.shape
    La = acol_ref.shape[1]
    Cp = wconv_ref.shape[1]
    md = qcol_ref.dtype                      # MXU input dtype (f32 or bf16)

    # ---- Conv1d(padding=1) as ONE im2col matmul per side, f32 accumulate ----
    bias = bconv_ref[...]                                        # (1, Cp) f32
    qt = jnp.dot(qcol_ref[...].reshape(TB * Lq, KEp), wconv_ref[...],
                 preferred_element_type=jnp.float32) + bias      # (TB*Lq, Cp)
    at = jnp.dot(acol_ref[...].reshape(TB * La, KEp), wconv_ref[...],
                 preferred_element_type=jnp.float32) + bias      # (TB*La, Cp)
    qt3 = qt.reshape(TB, Lq, Cp)             # Q^T per batch element
    at3 = at.reshape(TB, La, Cp)             # A^T per batch element

    # ---- G = tanh(Q^T W A): (TB, Lq, La), batched over the block ----
    qtw = jnp.dot(qt.astype(md), watt_ref[...],
                  preferred_element_type=jnp.float32)            # (TB*Lq, Cp)
    g = jnp.einsum('blc,bmc->blm', qtw.reshape(TB, Lq, Cp).astype(md),
                   at3.astype(md), preferred_element_type=jnp.float32)
    g = jnp.tanh(g)

    # ---- roQ: softmax over Lq of max over the answer axis ----
    gq = jnp.max(g, axis=2, keepdims=True)                       # (TB, Lq, 1)
    eq = jnp.exp(gq - jnp.max(gq, axis=1, keepdims=True))
    roq = eq * pl.reciprocal(jnp.sum(eq, axis=1, keepdims=True), approx=True)

    # ---- roA: softmax over La of max over the question axis ----
    ga = jnp.max(g, axis=1, keepdims=True)                       # (TB, 1, La)
    ea = jnp.exp(ga - jnp.max(ga, axis=2, keepdims=True))
    roa = ea * pl.reciprocal(jnp.sum(ea, axis=2, keepdims=True), approx=True)

    # ---- attentive pooled representations ----
    rq = jnp.sum(roq * qt3, axis=1)                              # (TB, Cp)
    ra = jnp.einsum('bxm,bmc->bxc', roa.astype(md), at3.astype(md),
                    preferred_element_type=jnp.float32)[:, 0, :]  # (TB, Cp)

    # ---- cosine similarity (eps-clamped norms; rsqrt on the EUP) ----
    eps = 1e-8
    num = jnp.sum(rq * ra, axis=1, keepdims=True)                # (TB, 1)
    inv_nq = jnp.minimum(
        jax.lax.rsqrt(jnp.sum(rq * rq, axis=1, keepdims=True)), 1.0 / eps)
    inv_na = jnp.minimum(
        jax.lax.rsqrt(jnp.sum(ra * ra, axis=1, keepdims=True)), 1.0 / eps)
    cos = num * inv_nq * inv_na                                  # (TB, 1)

    # ---- lane-dense output: move the (TB,1) column into a (1,TB) lane row
    # with a tiny mask+reduce (cheap, fully vectorized), then one store. ----
    rid = jax.lax.broadcasted_iota(jnp.int32, (TB, TB), 0)
    cid = jax.lax.broadcasted_iota(jnp.int32, (TB, TB), 1)
    eye = (rid == cid).astype(jnp.float32)
    out_ref[0] = jnp.sum(cos * eye, axis=0, keepdims=True)       # (1, TB)


@functools.partial(jax.jit, static_argnames=("batch_block", "compute_dtype"))
def attentive_pooling_forward(questions, answers, params, *, batch_block=8,
                              compute_dtype=jnp.float32):
    """questions: (B, Lq) int32, answers: (B, La) int32 -> (B,) f32."""
    emb = params["embedding"]                 # (V+1, E), row 0 == padding
    conv_w = params["conv_w"]                 # (K, E, C), tap-major
    conv_b = params["conv_b"]                 # (1, C)
    att_w = params["att_w"]                   # (C, C)

    B, Lq = questions.shape
    _, La = answers.shape
    K, E, C = conv_w.shape

    # ---- pad channel dims to multiples of 128 (zero padding keeps the math
    #      exact: padded conv/att columns and bias entries stay zero). ----
    KE = K * E
    KEp = _round_up(KE, 128)
    Cp = _round_up(C, 128)
    wconv = jnp.pad(conv_w.reshape(KE, C), ((0, KEp - KE), (0, Cp - C)))
    bconv = jnp.pad(conv_b, ((0, 0), (0, Cp - C))).astype(jnp.float32)
    watt = jnp.pad(att_w, ((0, Cp - C), (0, Cp - C)))

    # ---- glue: embedding gather + im2col for the K-tap conv (padding=1) ----
    def im2col(tokens, L):
        x = jnp.take(emb, tokens, axis=0).astype(jnp.float32)    # (B, L, E)
        xp = jnp.pad(x, ((0, 0), (1, 1), (0, 0)))
        cols = jnp.concatenate([xp[:, k:k + L, :] for k in range(K)], axis=-1)
        return jnp.pad(cols, ((0, 0), (0, 0), (0, KEp - KE)))    # (B, L, KEp)

    qcol = im2col(questions, Lq)
    acol = im2col(answers, La)

    # ---- batch-block the grid: TB elements per step ----
    TB = max(1, min(batch_block, B))
    B_pad = _round_up(B, TB)
    if B_pad != B:   # padded rows are all-zero -> harmless, sliced off below
        qcol = jnp.pad(qcol, ((0, B_pad - B), (0, 0), (0, 0)))
        acol = jnp.pad(acol, ((0, B_pad - B), (0, 0), (0, 0)))
    nb = B_pad // TB

    qcol = qcol.astype(compute_dtype)
    acol = acol.astype(compute_dtype)
    wconv = wconv.astype(compute_dtype)
    watt = watt.astype(compute_dtype)

    # ---- explicit VMEM budget; only raise the compiler limit when needed ----
    isz = jnp.dtype(compute_dtype).itemsize
    act = 2 * TB * (Lq + La) * KEp * isz                 # double-buffered inputs
    wgt = 2 * (KEp * Cp + Cp * Cp) * isz + 2 * Cp * 4    # default 2-deep buffers
    tmp = 4 * (3 * TB * Lq * Cp + 2 * TB * La * Cp + TB * Lq * La + 6 * TB * Cp)
    budget = act + wgt + tmp + (4 << 20)
    vmem_limit = min(budget, 48 << 20) if budget > (14 << 20) else None

    out = pl.pallas_call(
        _attentive_pooling_kernel,
        out_shape=jax.ShapeDtypeStruct((nb, 1, TB), jnp.float32),
        grid_spec=pltpu.PrefetchScalarGridSpec(
            num_scalar_prefetch=0,
            grid=(nb,),
            in_specs=[
                pl.BlockSpec((TB, Lq, KEp), lambda b: (b, 0, 0)),
                pl.BlockSpec((TB, La, KEp), lambda b: (b, 0, 0)),
                # constant-index weight blocks: DMA'd once, reused every step
                pl.BlockSpec((KEp, Cp), lambda b: (0, 0)),
                pl.BlockSpec((1, Cp), lambda b: (0, 0)),
                pl.BlockSpec((Cp, Cp), lambda b: (0, 0)),
            ],
            out_specs=pl.BlockSpec((1, 1, TB), lambda b: (b, 0, 0)),
        ),
        compiler_params=pltpu.CompilerParams(
            dimension_semantics=("parallel",),
            vmem_limit_bytes=vmem_limit),
    )(qcol, acol, wconv, bconv, watt)
    return out.reshape(B_pad)[:B]


def reference_forward(questions, answers, params):
    """Pure-JAX reference mirroring the PyTorch forward (f32)."""
    emb = params["embedding"]
    conv_w = params["conv_w"]
    conv_b = params["conv_b"]
    att_w = params["att_w"]
    K = conv_w.shape[0]

    def encode(tokens):
        x = jnp.take(emb, tokens, axis=0).astype(jnp.float32)    # (B, L, E)
        xp = jnp.pad(x, ((0, 0), (1, 1), (0, 0)))
        L = tokens.shape[1]
        acc = jnp.zeros((tokens.shape[0], L, conv_w.shape[2]), jnp.float32)
        for k in range(K):
            acc = acc + jnp.einsum('ble,ec->blc', xp[:, k:k + L, :], conv_w[k])
        return acc + conv_b[0]                                   # (B, L, C) = Q^T

    Qt = encode(questions)
    At = encode(answers)
    G = jnp.tanh(jnp.einsum('bqc,cd,bad->bqa', Qt, att_w, At))
    roQ = jax.nn.softmax(jnp.max(G, axis=2), axis=1)
    roA = jax.nn.softmax(jnp.max(G, axis=1), axis=1)
    rQ = jnp.einsum('bq,bqc->bc', roQ, Qt)
    rA = jnp.einsum('ba,bac->bc', roA, At)
    num = jnp.sum(rQ * rA, axis=1)
    nq = jnp.maximum(jnp.sqrt(jnp.sum(rQ * rQ, axis=1)), 1e-8)
    na = jnp.maximum(jnp.sqrt(jnp.sum(rA * rA, axis=1)), 1e-8)
    return num / (nq * na)


def init_params(key, vocab_size, embedding_size, conv_filters, context_len):
    k_emb, k_cw, k_cb, k_att = jax.random.split(key, 4)
    # nn.Embedding(vocab+1, E, padding_idx=0): N(0,1) init, row 0 zeroed.
    emb = jax.random.normal(k_emb, (vocab_size + 1, embedding_size),
                            jnp.float32)
    emb = emb.at[0].set(0.0)
    # nn.Conv1d default init: uniform(-1/sqrt(fan_in), 1/sqrt(fan_in)).
    fan_in = embedding_size * context_len
    bound = 1.0 / (fan_in ** 0.5)
    conv_w = jax.random.uniform(k_cw,
                                (context_len, embedding_size, conv_filters),
                                jnp.float32, -bound, bound)
    conv_b = jax.random.uniform(k_cb, (1, conv_filters), jnp.float32,
                                -bound, bound)
    # self.weight: normal(mean=0, std=1).
    att_w = jax.random.normal(k_att, (conv_filters, conv_filters), jnp.float32)
    return {"embedding": emb, "conv_w": conv_w, "conv_b": conv_b,
            "att_w": att_w}


if __name__ == "__main__":
    B = 16          # batch (blocked TB=8 -> 2 parallel grid steps)
    VOCAB = 50
    E = 32          # embedding_size
    C = 128         # convolutional_filters (small stand-in for 400)
    K = 3           # context_len
    LQ = 16         # question length
    LA = 8          # answer length

    key = jax.random.PRNGKey(0)
    k_params, k_q, k_a = jax.random.split(key, 3)
    params = init_params(k_params, VOCAB, E, C, K)

    questions = jax.random.randint(k_q, (B, LQ), 0, VOCAB + 1, jnp.int32)
    answers = jax.random.randint(k_a, (B, LA), 0, VOCAB + 1, jnp.int32)

    # f32 path: validated against the pure-JAX reference.
    out = jax.block_until_ready(
        attentive_pooling_forward(questions, answers, params,
                                  batch_block=8, compute_dtype=jnp.float32))
    ref = jax.block_until_ready(reference_forward(questions, answers, params))
    if not bool(jnp.allclose(out, ref, atol=2e-3, rtol=2e-3)):
        raise SystemExit(f"mismatch: kernel={out} reference={ref}")

    # bf16-input / f32-accumulate fast path (v6e/v7x MXU): exercised + sanity
    # checked (cosine outputs must be finite and bounded by 1).
    out_bf16 = jax.block_until_ready(
        attentive_pooling_forward(questions, answers, params,
                                  batch_block=8, compute_dtype=jnp.bfloat16))
    if not bool(jnp.all(jnp.isfinite(out_bf16))
                and (jnp.max(jnp.abs(out_bf16)) <= 1.001)):
        raise SystemExit(f"bf16 path produced invalid values: {out_bf16}")

    print("KERNEL_OK")
</pallas_src>

<mosaic_0001>
module attributes {stable_mosaic.version = 11 : i64} {
  func.func @_attentive_pooling_kernel(%arg0: i32, %arg1: memref<8x16x128xf32, #tpu.memory_space<vmem>>, %arg2: memref<8x8x128xf32, #tpu.memory_space<vmem>>, %arg3: memref<128x128xf32, #tpu.memory_space<vmem>>, %arg4: memref<1x128xf32, #tpu.memory_space<vmem>>, %arg5: memref<128x128xf32, #tpu.memory_space<vmem>>, %arg6: memref<1x1x8xf32, #tpu.memory_space<vmem>>) attributes {dimension_semantics = [#tpu.dimension_semantics<parallel>], iteration_bounds = array<i64: 2>, scalar_prefetch = 0 : i64, scratch_operands = 0 : i64, tpu.core_type = #tpu.core_type<tc>, window_params = [{transform_indices = @transform_0, window_bounds = array<i64: 8, 16, 128>}, {transform_indices = @transform_1, window_bounds = array<i64: 8, 8, 128>}, {pipeline_mode = #tpu.pipeline_mode<synchronous>, transform_indices = @transform_2, window_bounds = array<i64: 128, 128>}, {pipeline_mode = #tpu.pipeline_mode<synchronous>, transform_indices = @transform_3, window_bounds = array<i64: 1, 128>}, {pipeline_mode = #tpu.pipeline_mode<synchronous>, transform_indices = @transform_4, window_bounds = array<i64: 128, 128>}, {transform_indices = @transform_5, window_bounds = array<i64: 1, 1, 8>}]} {
    %c0 = arith.constant 0 : index
    %c0_0 = arith.constant 0 : index
    %0 = vector.load %arg4[%c0, %c0_0] : memref<1x128xf32, #tpu.memory_space<vmem>>, vector<1x128xf32>
    %c0_1 = arith.constant 0 : index
    %c0_2 = arith.constant 0 : index
    %c0_3 = arith.constant 0 : index
    %1 = vector.load %arg1[%c0_1, %c0_2, %c0_3] : memref<8x16x128xf32, #tpu.memory_space<vmem>>, vector<8x16x128xf32>
    %2 = vector.shape_cast %1 : vector<8x16x128xf32> to vector<128x128xf32>
    %c0_4 = arith.constant 0 : index
    %c0_5 = arith.constant 0 : index
    %3 = vector.load %arg3[%c0_4, %c0_5] : memref<128x128xf32, #tpu.memory_space<vmem>>, vector<128x128xf32>
    %cst = arith.constant dense<0.000000e+00> : vector<128x128xf32>
    %4 = tpu.matmul %2, %3, %cst {dimension_numbers = #tpu.dot_dimension_numbers<[1], [0], [0], [1], [0, 0, 1, 1], [], []>} : vector<128x128xf32>, vector<128x128xf32>, vector<128x128xf32> -> vector<128x128xf32>
    %5 = vector.broadcast %0 : vector<1x128xf32> to vector<128x128xf32>
    %6 = arith.addf %4, %5 : vector<128x128xf32>
    %c0_6 = arith.constant 0 : index
    %c0_7 = arith.constant 0 : index
    %c0_8 = arith.constant 0 : index
    %7 = vector.load %arg2[%c0_6, %c0_7, %c0_8] : memref<8x8x128xf32, #tpu.memory_space<vmem>>, vector<8x8x128xf32>
    %8 = vector.shape_cast %7 : vector<8x8x128xf32> to vector<64x128xf32>
    %c0_9 = arith.constant 0 : index
    %c0_10 = arith.constant 0 : index
    %9 = vector.load %arg3[%c0_9, %c0_10] : memref<128x128xf32, #tpu.memory_space<vmem>>, vector<128x128xf32>
    %cst_11 = arith.constant dense<0.000000e+00> : vector<64x128xf32>
    %10 = tpu.matmul %8, %9, %cst_11 {dimension_numbers = #tpu.dot_dimension_numbers<[1], [0], [0], [1], [0, 0, 1, 1], [], []>} : vector<64x128xf32>, vector<128x128xf32>, vector<64x128xf32> -> vector<64x128xf32>
    %11 = vector.broadcast %0 : vector<1x128xf32> to vector<64x128xf32>
    %12 = arith.addf %10, %11 : vector<64x128xf32>
    %13 = vector.shape_cast %6 : vector<128x128xf32> to vector<8x16x128xf32>
    %14 = vector.shape_cast %12 : vector<64x128xf32> to vector<8x8x128xf32>
    %c0_12 = arith.constant 0 : index
    %c0_13 = arith.constant 0 : index
    %15 = vector.load %arg5[%c0_12, %c0_13] : memref<128x128xf32, #tpu.memory_space<vmem>>, vector<128x128xf32>
    %cst_14 = arith.constant dense<0.000000e+00> : vector<128x128xf32>
    %16 = tpu.matmul %6, %15, %cst_14 {dimension_numbers = #tpu.dot_dimension_numbers<[1], [0], [0], [1], [0, 0, 1, 1], [], []>} : vector<128x128xf32>, vector<128x128xf32>, vector<128x128xf32> -> vector<128x128xf32>
    %17 = vector.shape_cast %16 : vector<128x128xf32> to vector<8x16x128xf32>
    "tpu.trace_start"() <{level = 10 : i32, message = "blc,bmc->blm"}> : () -> ()
    %cst_15 = arith.constant dense<0.000000e+00> : vector<8x16x8xf32>
    %18 = tpu.matmul %17, %14, %cst_15 {dimension_numbers = #tpu.dot_dimension_numbers<[2], [2], [1], [1], [0, 0, 0, 1, 1, 1], [0], [0]>} : vector<8x16x128xf32>, vector<8x8x128xf32>, vector<8x16x8xf32> -> vector<8x16x8xf32>
    "tpu.trace_stop"() : () -> ()
    %19 = math.tanh %18 : vector<8x16x8xf32>
    %cst_16 = arith.constant dense<0xFF800000> : vector<8x16xf32>
    %20 = vector.multi_reduction <maximumf>, %19, %cst_16 [2] : vector<8x16x8xf32> to vector<8x16xf32>
    %21 = vector.shape_cast %20 : vector<8x16xf32> to vector<8x16x1xf32>
    %cst_17 = arith.constant dense<0xFF800000> : vector<8x1xf32>
    %22 = vector.multi_reduction <maximumf>, %21, %cst_17 [1] : vector<8x16x1xf32> to vector<8x1xf32>
    %23 = vector.shape_cast %22 : vector<8x1xf32> to vector<8x1x1xf32>
    %24 = vector.broadcast %23 : vector<8x1x1xf32> to vector<8x16x1xf32>
    %25 = arith.subf %21, %24 : vector<8x16x1xf32>
    %26 = math.exp %25 : vector<8x16x1xf32>
    %cst_18 = arith.constant dense<0.000000e+00> : vector<8x1xf32>
    %27 = vector.multi_reduction <add>, %26, %cst_18 [1] : vector<8x16x1xf32> to vector<8x1xf32>
    %28 = vector.shape_cast %27 : vector<8x1xf32> to vector<8x1x1xf32>
    %29 = tpu.reciprocal %28 {approx = true} : vector<8x1x1xf32> -> vector<8x1x1xf32>
    %30 = vector.broadcast %29 : vector<8x1x1xf32> to vector<8x16x1xf32>
    %31 = arith.mulf %26, %30 : vector<8x16x1xf32>
    %cst_19 = arith.constant dense<0xFF800000> : vector<8x8xf32>
    %32 = vector.multi_reduction <maximumf>, %19, %cst_19 [1] : vector<8x16x8xf32> to vector<8x8xf32>
    %33 = vector.shape_cast %32 : vector<8x8xf32> to vector<8x1x8xf32>
    %cst_20 = arith.constant dense<0xFF800000> : vector<8x1xf32>
    %34 = vector.multi_reduction <maximumf>, %33, %cst_20 [2] : vector<8x1x8xf32> to vector<8x1xf32>
    %35 = vector.shape_cast %34 : vector<8x1xf32> to vector<8x1x1xf32>
    %36 = vector.broadcast %35 : vector<8x1x1xf32> to vector<8x1x8xf32>
    %37 = arith.subf %33, %36 : vector<8x1x8xf32>
    %38 = math.exp %37 : vector<8x1x8xf32>
    %cst_21 = arith.constant dense<0.000000e+00> : vector<8x1xf32>
    %39 = vector.multi_reduction <add>, %38, %cst_21 [2] : vector<8x1x8xf32> to vector<8x1xf32>
    %40 = vector.shape_cast %39 : vector<8x1xf32> to vector<8x1x1xf32>
    %41 = tpu.reciprocal %40 {approx = true} : vector<8x1x1xf32> -> vector<8x1x1xf32>
    %42 = vector.broadcast %41 : vector<8x1x1xf32> to vector<8x1x8xf32>
    %43 = arith.mulf %38, %42 : vector<8x1x8xf32>
    %44 = vector.broadcast %31 : vector<8x16x1xf32> to vector<8x16x128xf32>
    %45 = arith.mulf %44, %13 : vector<8x16x128xf32>
    %cst_22 = arith.constant dense<0.000000e+00> : vector<8x128xf32>
    %46 = vector.multi_reduction <add>, %45, %cst_22 [1] : vector<8x16x128xf32> to vector<8x128xf32>
    "tpu.trace_start"() <{level = 10 : i32, message = "bxm,bmc->bxc"}> : () -> ()
    %cst_23 = arith.constant dense<0.000000e+00> : vector<8x1x128xf32>
    %47 = tpu.matmul %43, %14, %cst_23 {dimension_numbers = #tpu.dot_dimension_numbers<[2], [1], [1], [2], [0, 0, 0, 1, 1, 2], [0], [0]>} : vector<8x1x8xf32>, vector<8x8x128xf32>, vector<8x1x128xf32> -> vector<8x1x128xf32>
    "tpu.trace_stop"() : () -> ()
    %48 = vector.shape_cast %47 : vector<8x1x128xf32> to vector<8x128xf32>
    %49 = arith.mulf %46, %48 : vector<8x128xf32>
    %cst_24 = arith.constant dense<0.000000e+00> : vector<8xf32>
    %50 = vector.multi_reduction <add>, %49, %cst_24 [1] : vector<8x128xf32> to vector<8xf32>
    %51 = vector.shape_cast %50 : vector<8xf32> to vector<8x1xf32>
    %52 = arith.mulf %46, %46 : vector<8x128xf32>
    %cst_25 = arith.constant dense<0.000000e+00> : vector<8xf32>
    %53 = vector.multi_reduction <add>, %52, %cst_25 [1] : vector<8x128xf32> to vector<8xf32>
    %54 = vector.shape_cast %53 : vector<8xf32> to vector<8x1xf32>
    %55 = math.rsqrt %54 : vector<8x1xf32>
    %cst_26 = arith.constant 1.000000e+08 : f32
    %56 = vector.broadcast %cst_26 : f32 to vector<8x1xf32>
    %57 = arith.minimumf %55, %56 : vector<8x1xf32>
    %58 = arith.mulf %48, %48 : vector<8x128xf32>
    %cst_27 = arith.constant dense<0.000000e+00> : vector<8xf32>
    %59 = vector.multi_reduction <add>, %58, %cst_27 [1] : vector<8x128xf32> to vector<8xf32>
    %60 = vector.shape_cast %59 : vector<8xf32> to vector<8x1xf32>
    %61 = math.rsqrt %60 : vector<8x1xf32>
    %cst_28 = arith.constant 1.000000e+08 : f32
    %62 = vector.broadcast %cst_28 : f32 to vector<8x1xf32>
    %63 = arith.minimumf %61, %62 : vector<8x1xf32>
    %64 = arith.mulf %51, %57 : vector<8x1xf32>
    %65 = arith.mulf %64, %63 : vector<8x1xf32>
    %66 = tpu.iota {dimensions = array<i32: 0>} : vector<8x8xi32>
    %67 = tpu.iota {dimensions = array<i32: 1>} : vector<8x8xi32>
    %68 = arith.cmpi eq, %66, %67 : vector<8x8xi32>
    %69 = arith.extui %68 : vector<8x8xi1> to vector<8x8xi32>
    %70 = arith.sitofp %69 : vector<8x8xi32> to vector<8x8xf32>
    %71 = vector.broadcast %65 : vector<8x1xf32> to vector<8x8xf32>
    %72 = arith.mulf %71, %70 : vector<8x8xf32>
    %cst_29 = arith.constant dense<0.000000e+00> : vector<8xf32>
    %73 = vector.multi_reduction <add>, %72, %cst_29 [0] : vector<8x8xf32> to vector<8xf32>
    %74 = vector.shape_cast %73 : vector<8xf32> to vector<1x8xf32>
    %c0_30 = arith.constant 0 : index
    %c0_31 = arith.constant 0 : index
    %c0_32 = arith.constant 0 : index
    %75 = vector.load %arg6[%c0_30, %c0_31, %c0_32] : memref<1x1x8xf32, #tpu.memory_space<vmem>>, vector<1x1x8xf32>
    %76 = vector.shape_cast %75 : vector<1x1x8xf32> to vector<1x8xf32>
    %77 = vector.shape_cast %74 : vector<1x8xf32> to vector<1x1x8xf32>
    tpu.vector_store %arg6[%c0_30, %c0_31, %c0_32], %77 {strides = array<i32>} : memref<1x1x8xf32, #tpu.memory_space<vmem>>, vector<1x1x8xf32>,
    return
  }
  func.func @transform_0(%arg0: i32) -> (i32, i32, i32) {
    %c0_i32 = arith.constant 0 : i32
    %c0_i32_0 = arith.constant 0 : i32
    %c0_i32_1 = arith.constant 0 : i32
    return %arg0, %c0_i32, %c0_i32_0 : i32, i32, i32
  }
  func.func @transform_1(%arg0: i32) -> (i32, i32, i32) {
    %c0_i32 = arith.constant 0 : i32
    %c0_i32_0 = arith.constant 0 : i32
    %c0_i32_1 = arith.constant 0 : i32
    return %arg0, %c0_i32, %c0_i32_0 : i32, i32, i32
  }
  func.func @transform_2(%arg0: i32) -> (i32, i32) {
    %c0_i32 = arith.constant 0 : i32
    %c0_i32_0 = arith.constant 0 : i32
    %c0_i32_1 = arith.constant 0 : i32
    return %c0_i32, %c0_i32_0 : i32, i32
  }
  func.func @transform_3(%arg0: i32) -> (i32, i32) {
    %c0_i32 = arith.constant 0 : i32
    %c0_i32_0 = arith.constant 0 : i32
    %c0_i32_1 = arith.constant 0 : i32
    return %c0_i32, %c0_i32_0 : i32, i32
  }
  func.func @transform_4(%arg0: i32) -> (i32, i32) {
    %c0_i32 = arith.constant 0 : i32
    %c0_i32_0 = arith.constant 0 : i32
    %c0_i32_1 = arith.constant 0 : i32
    return %c0_i32, %c0_i32_0 : i32, i32
  }
  func.func @transform_5(%arg0: i32) -> (i32, i32, i32) {
    %c0_i32 = arith.constant 0 : i32
    %c0_i32_0 = arith.constant 0 : i32
    %c0_i32_1 = arith.constant 0 : i32
    return %arg0, %c0_i32, %c0_i32_0 : i32, i32, i32
  }
}

</mosaic_0001>

<llo_original>
// kernel: attentive_pooling_forward.1
$region0: #{attentive_pooling_forward.1}
  #allocation0 [shape = 'u32[]', space=smem, size = 0x4, offset = 0x4, fixed_abs, tag = 'smem constant byte address 0x4 - core index']
  #allocation1 [shape = 'u32[72,128]{1,0:T(1,128)}', space=vmem, size = 0x9000, scoped, tag = 'internal scratch']
  %s0 = inlined_call_operand.vmem [shape: f32[16,16,128], index: 0, kind: input, shape index: {}]
  %s1 = inlined_call_operand.vmem [shape: f32[16,8,128], index: 1, kind: input, shape index: {}]
  %s2 = inlined_call_operand.vmem [shape: f32[128,128], index: 2, kind: input, shape index: {}]
  %s3 = inlined_call_operand.vmem [shape: f32[1,128], index: 3, kind: input, shape index: {}]
  %s4 = inlined_call_operand.vmem [shape: f32[128,128], index: 4, kind: input, shape index: {}]
  %s5 = inlined_call_operand.vmem [shape: f32[2,1,8], index: 5, kind: output, shape index: {}]
  %s6 = sld [smem:[#allocation0]]
  $region53: #{attentive_pooling_forward.1} parent=0
    _
  %s8 = ssub.s32 1, %s6
  %s9 = scalar_select 0, %s8, %s6
  loop: start=0, step=1, limit=4
  $region2: #{attentive_pooling_forward.1} parent=0 // loop_pre_header
    _
  $region3: #{attentive_pooling_forward.1} parent=0 // loop_header
    %s11 = sphi 0, %s15
    %p12 = scmp.ge.s32.totalorder %s11, 4
    %s21 = sphi 0, %s23
    %s24 = sphi 0, %s21
    %s25 = sphi 0, %s24
    %s41 = sphi 0, %s25
    %s47 = sphi 0, %s49
    %s50 = sphi 0, %s47
    %s51 = sphi 0, %s50
    %s67 = sphi 0, %s51
    %s71 = sphi 0, %s71
    %s73 = sphi 0, %s71
    %s74 = sphi 0, %s73
    %s88 = sphi 0, %s74
    %s92 = sphi 0, %s92
    %s94 = sphi 0, %s92
    %s95 = sphi 0, %s94
    %s109 = sphi 0, %s95
    %s113 = sphi 0, %s113
    %s115 = sphi 0, %s113
    %s116 = sphi 0, %s115
    %s130 = sphi 0, %s116
    %s136 = sphi 0, %s138
    %s139 = sphi 0, %s136
    %s140 = sphi 0, %s139
    %s156 = sphi 0, %s140
  $region4: #{attentive_pooling_forward.1} parent=0 // loop_header_branch
    %14 = sbr.rel (%p12) target = $region8
  $region5: #{attentive_pooling_forward.1} parent=0 // loop_body
    %s16 = ssub.s32 %s11, 1
    %s17 = ssub.s32 %s11, 2
    %s18 = sadd.s32 %s11, 1
    %s19 = ssub.s32 %s11, %s18
    %p20 = scmp.eq.s32.totalorder %s19, 0
    %s22 = sadd.s32 %s21, 1
    %s23 = scalar_select %p20, %s21, %s22
    %p26 = pneg %p20
    %p27 = scmp.eq.s32.totalorder %s11, 1
    %p28 = por %p26, %p27
    %p29 = scmp.ne.s32.totalorder %s21, %s24
    %p30 = scmp.eq.s32.totalorder %s11, 0
    %p31 = por %p29, %p30
    %p32 = scmp.ne.s32.totalorder %s21, %s24
    %p33 = scmp.eq.s32.totalorder %s16, 1
    %p34 = por %p32, %p33
    %p35 = scmp.ne.s32.totalorder %s24, %s25
    %p36 = scmp.eq.s32.totalorder %s16, 0
    %p37 = por %p35, %p36
    %p38 = scmp.ne.s32.totalorder %s24, %s25
    %p39 = scmp.eq.s32.totalorder %s17, 1
    %p40 = por %p38, %p39
    %p42 = scmp.ne.s32.totalorder %s25, %s41
    %p43 = scmp.eq.s32.totalorder %s17, 0
    %p44 = por %p42, %p43
    %s45 = ssub.s32 %s11, %s18
    %p46 = scmp.eq.s32.totalorder %s45, 0
    %s48 = sadd.s32 %s47, 1
    %s49 = scalar_select %p46, %s47, %s48
    %p52 = pneg %p46
    %p53 = scmp.eq.s32.totalorder %s11, 1
    %p54 = por %p52, %p53
    %p55 = scmp.ne.s32.totalorder %s47, %s50
    %p56 = scmp.eq.s32.totalorder %s11, 0
    %p57 = por %p55, %p56
    %p58 = scmp.ne.s32.totalorder %s47, %s50
    %p59 = scmp.eq.s32.totalorder %s16, 1
    %p60 = por %p58, %p59
    %p61 = scmp.ne.s32.totalorder %s50, %s51
    %p62 = scmp.eq.s32.totalorder %s16, 0
    %p63 = por %p61, %p62
    %p64 = scmp.ne.s32.totalorder %s50, %s51
    %p65 = scmp.eq.s32.totalorder %s17, 1
    %p66 = por %p64, %p65
    %p68 = scmp.ne.s32.totalorder %s51, %s67
    %p69 = scmp.eq.s32.totalorder %s17, 0
    %p70 = por %p68, %p69
    %s72 = sadd.s32 %s71, 1
    %p75 = scmp.eq.s32.totalorder %s11, 1
    %p76 = scmp.ne.s32.totalorder %s71, %s73
    %p77 = scmp.eq.s32.totalorder %s11, 0
    %p78 = por %p76, %p77
    %p79 = scmp.ne.s32.totalorder %s71, %s73
    %p80 = scmp.eq.s32.totalorder %s16, 1
    %p81 = por %p79, %p80
    %p82 = scmp.ne.s32.totalorder %s73, %s74
    %p83 = scmp.eq.s32.totalorder %s16, 0
    %p84 = por %p82, %p83
    %p85 = scmp.ne.s32.totalorder %s73, %s74
    %p86 = scmp.eq.s32.totalorder %s17, 1
    %p87 = por %p85, %p86
    %p89 = scmp.ne.s32.totalorder %s74, %s88
    %p90 = scmp.eq.s32.totalorder %s17, 0
    %p91 = por %p89, %p90
    %s93 = sadd.s32 %s92, 1
    %p96 = scmp.eq.s32.totalorder %s11, 1
    %p97 = scmp.ne.s32.totalorder %s92, %s94
    %p98 = scmp.eq.s32.totalorder %s11, 0
    %p99 = por %p97, %p98
    %p100 = scmp.ne.s32.totalorder %s92, %s94
    %p101 = scmp.eq.s32.totalorder %s16, 1
    %p102 = por %p100, %p101
    %p103 = scmp.ne.s32.totalorder %s94, %s95
    %p104 = scmp.eq.s32.totalorder %s16, 0
    %p105 = por %p103, %p104
    %p106 = scmp.ne.s32.totalorder %s94, %s95
    %p107 = scmp.eq.s32.totalorder %s17, 1
    %p108 = por %p106, %p107
    %p110 = scmp.ne.s32.totalorder %s95, %s109
    %p111 = scmp.eq.s32.totalorder %s17, 0
    %p112 = por %p110, %p111
    %s114 = sadd.s32 %s113, 1
    %p117 = scmp.eq.s32.totalorder %s11, 1
    %p118 = scmp.ne.s32.totalorder %s113, %s115
    %p119 = scmp.eq.s32.totalorder %s11, 0
    %p120 = por %p118, %p119
    %p121 = scmp.ne.s32.totalorder %s113, %s115
    %p122 = scmp.eq.s32.totalorder %s16, 1
    %p123 = por %p121, %p122
    %p124 = scmp.ne.s32.totalorder %s115, %s116
    %p125 = scmp.eq.s32.totalorder %s16, 0
    %p126 = por %p124, %p125
    %p127 = scmp.ne.s32.totalorder %s115, %s116
    %p128 = scmp.eq.s32.totalorder %s17, 1
    %p129 = por %p127, %p128
    %p131 = scmp.ne.s32.totalorder %s116, %s130
    %p132 = scmp.eq.s32.totalorder %s17, 0
    %p133 = por %p131, %p132
    %s134 = ssub.s32 %s11, %s18
    %p135 = scmp.eq.s32.totalorder %s134, 0
    %s137 = sadd.s32 %s136, 1
    %s138 = scalar_select %p135, %s136, %s137
    %p141 = pneg %p135
    %p142 = scmp.eq.s32.totalorder %s11, 1
    %p143 = por %p141, %p142
    %p144 = scmp.ne.s32.totalorder %s136, %s139
    %p145 = scmp.eq.s32.totalorder %s11, 0
    %p146 = por %p144, %p145
    %p147 = scmp.ne.s32.totalorder %s136, %s139
    %p148 = scmp.eq.s32.totalorder %s16, 1
    %p149 = por %p147, %p148
    %p150 = scmp.ne.s32.totalorder %s139, %s140
    %p151 = scmp.eq.s32.totalorder %s16, 0
    %p152 = por %p150, %p151
    %p153 = scmp.ne.s32.totalorder %s139, %s140
    %p154 = scmp.eq.s32.totalorder %s17, 1
    %p155 = por %p153, %p154
    %p157 = scmp.ne.s32.totalorder %s140, %s156
    %p158 = scmp.eq.s32.totalorder %s17, 0
    %p159 = por %p157, %p158
    %p160 = scmp.le.s32.totalorder 1, %s11
    %p161 = scmp.lt.s32.totalorder %s11, 3
    %p162 = pnand %p160, %p161
    %p163 = pneg %p162
    // Predicated region
    $region9: #{attentive_pooling_forward.1} parent=5 // pred_check
      _
    $region10: #{attentive_pooling_forward.1} parent=5 // pred_check_branch
      %165 = sbr.rel (%p162) target = $region12
    $region11: #{attentive_pooling_forward.1} parent=5 // pred_region
      %s166 = ssub.s32 %s11, 1
      // Predicated region
      $region13: #{attentive_pooling_forward.1} parent=11 // pred_check
        %p167 = pneg %p84
      $region14: #{attentive_pooling_forward.1} parent=11 // pred_check_branch
        %169 = sbr.rel (%p167) target = $region16
      $region15: #{attentive_pooling_forward.1} parent=11 // pred_region
        _
      $region16: #{attentive_pooling_forward.1} parent=11 // pred_fallthru
        _
      // Predicated region
      $region17: #{attentive_pooling_forward.1} parent=11 // pred_check
        %p170 = pneg %p105
      $region18: #{attentive_pooling_forward.1} parent=11 // pred_check_branch
        %172 = sbr.rel (%p170) target = $region20
      $region19: #{attentive_pooling_forward.1} parent=11 // pred_region
        _
      $region20: #{attentive_pooling_forward.1} parent=11 // pred_fallthru
        _
      // Predicated region
      $region21: #{attentive_pooling_forward.1} parent=11 // pred_check
        %p173 = pneg %p126
      $region22: #{attentive_pooling_forward.1} parent=11 // pred_check_branch
        %175 = sbr.rel (%p173) target = $region24
      $region23: #{attentive_pooling_forward.1} parent=11 // pred_region
        _
      $region24: #{attentive_pooling_forward.1} parent=11 // pred_fallthru
        _
    $region12: #{attentive_pooling_forward.1} parent=5 // pred_fallthru
      _
    %p176 = scmp.lt.s32.totalorder %s11, 2
    // Predicated region
    $region25: #{attentive_pooling_forward.1} parent=5 // pred_check
      %p177 = pneg %p176
    $region26: #{attentive_pooling_forward.1} parent=5 // pred_check_branch
      %179 = sbr.rel (%p177) target = $region28
    $region27: #{attentive_pooling_forward.1} parent=5 // pred_region
      // Predicated region
      $region29: #{attentive_pooling_forward.1} parent=27 // pred_check
        %p180 = pneg %p31
      $region30: #{attentive_pooling_forward.1} parent=27 // pred_check_branch
        %182 = sbr.rel (%p180) target = $region32
      $region31: #{attentive_pooling_forward.1} parent=27 // pred_region
        %s183 = smul.u32 8, %s11
        %p184 = scmp.lt.s32.totalorder %s183, 15
        %s185 = scalar_select %p184, %s183, 15
        %s186 = smul.addr %s185, 2
        %s187 = smul.addr %s186, 8
        %s188 = scalar_lea.vmem %s0, %s187
        %s189 = smul.u32 8, %s11
      $region32: #{attentive_pooling_forward.1} parent=27 // pred_fallthru
        _
      // Predicated region
      $region33: #{attentive_pooling_forward.1} parent=27 // pred_check
        %p190 = pneg %p57
      $region34: #{attentive_pooling_forward.1} parent=27 // pred_check_branch
        %192 = sbr.rel (%p190) target = $region36
      $region35: #{attentive_pooling_forward.1} parent=27 // pred_region
        %s193 = smul.u32 8, %s11
        %p194 = scmp.lt.s32.totalorder %s193, 15
        %s195 = scalar_select %p194, %s193, 15
        %s196 = smul.addr %s195, 8
        %s197 = scalar_lea.vmem %s1, %s196
        %s198 = smul.u32 8, %s11
      $region36: #{attentive_pooling_forward.1} parent=27 // pred_fallthru
        _
    $region28: #{attentive_pooling_forward.1} parent=5 // pred_fallthru
      _
    %p199 = scmp.le.s32.totalorder 1, %s11
    %p200 = scmp.lt.s32.totalorder %s11, 3
    %p201 = pnand %p199, %p200
    %p202 = pneg %p201
    // Predicated region
    $region37: #{attentive_pooling_forward.1} parent=5 // pred_check
      _
    $region38: #{attentive_pooling_forward.1} parent=5 // pred_check_branch
      %204 = sbr.rel (%p201) target = $region40
    $region39: #{attentive_pooling_forward.1} parent=5 // pred_region
      %s205 = ssub.s32 %s11, 1
      %s206 = smul.u32 8, %s16
      %p207 = scmp.lt.s32.totalorder %s206, 15
      %s208 = scalar_select %p207, %s206, 15
      %s209 = smul.addr %s208, 2
      %s210 = smul.addr %s209, 8
      %s211 = scalar_lea.vmem %s0, %s210
      %p212 = pneg %p37
      %p213 = pneg %p34
      %s214 = smul.u32 8, %s16
      %p215 = scmp.lt.s32.totalorder %s214, 15
      %s216 = scalar_select %p215, %s214, 15
      %s217 = smul.addr %s216, 8
      %s218 = scalar_lea.vmem %s1, %s217
      %p219 = pneg %p63
      %p220 = pneg %p60
      %p221 = pneg %p84
      %p222 = pneg %p81
      %p223 = pneg %p105
      %p224 = pneg %p102
      %p225 = pneg %p126
      %p226 = pneg %p123
      %p227 = pneg %p152
      %p228 = pneg %p149
      %p229 = scmp.lt.s32.totalorder %s16, 1
      %s230 = scalar_select %p229, %s16, 1
      %s231 = scalar_lea.vmem %s5, %s230
      %s232 = smul.u32 8, %s16
      %p233 = scmp.lt.s32.totalorder %s232, 15
      %s234 = scalar_select %p233, %s232, 15
      %s235 = smul.addr %s234, 2
      %s236 = smul.addr %s235, 8
      %s237 = scalar_lea.vmem %s0, %s236
      %s238 = smul.u32 8, %s16
      %s239 = smul.u32 8, %s16
      %p240 = scmp.lt.s32.totalorder %s239, 15
      %s241 = scalar_select %p240, %s239, 15
      %s242 = smul.addr %s241, 8
      %s243 = scalar_lea.vmem %s1, %s242
      %s244 = smul.u32 8, %s16
      %p245 = scmp.lt.s32.totalorder %s16, 1
      %s246 = scalar_select %p245, %s16, 1
      %s247 = scalar_lea.vmem %s5, %s246
      %v248 = vld [vmem:[%s3] sm:$0x1]
      %v249 = vld [vmem:[%s237] sm:$0xff]
      %v250 = vld [vmem:[%s237 + $0x8] sm:$0xff]
      %v251 = vld [vmem:[%s237 + $0x10] sm:$0xff]
      %v252 = vld [vmem:[%s237 + $0x18] sm:$0xff]
      %v253 = vld [vmem:[%s237 + $0x20] sm:$0xff]
      %v254 = vld [vmem:[%s237 + $0x28] sm:$0xff]
      %v255 = vld [vmem:[%s237 + $0x30] sm:$0xff]
      %v256 = vld [vmem:[%s237 + $0x38] sm:$0xff]
      %v257 = vld [vmem:[%s237 + $0x40] sm:$0xff]
      %v258 = vld [vmem:[%s237 + $0x48] sm:$0xff]
      %v259 = vld [vmem:[%s237 + $0x50] sm:$0xff]
      %v260 = vld [vmem:[%s237 + $0x58] sm:$0xff]
      %v261 = vld [vmem:[%s237 + $0x60] sm:$0xff]
      %v262 = vld [vmem:[%s237 + $0x68] sm:$0xff]
      %v263 = vld [vmem:[%s237 + $0x70] sm:$0xff]
      %v264 = vld [vmem:[%s237 + $0x78] sm:$0xff]
      %v265 = vld [vmem:[%s2] sm:$0xff]
      %v266 = vld [vmem:[%s2 + $0x8] sm:$0xff]
      %v267 = vld [vmem:[%s2 + $0x10] sm:$0xff]
      %v268 = vld [vmem:[%s2 + $0x18] sm:$0xff]
      %v269 = vld [vmem:[%s2 + $0x20] sm:$0xff]
      %v270 = vld [vmem:[%s2 + $0x28] sm:$0xff]
      %v271 = vld [vmem:[%s2 + $0x30] sm:$0xff]
      %v272 = vld [vmem:[%s2 + $0x38] sm:$0xff]
      %v273 = vld [vmem:[%s2 + $0x40] sm:$0xff]
      %v274 = vld [vmem:[%s2 + $0x48] sm:$0xff]
      %v275 = vld [vmem:[%s2 + $0x50] sm:$0xff]
      %v276 = vld [vmem:[%s2 + $0x58] sm:$0xff]
      %v277 = vld [vmem:[%s2 + $0x60] sm:$0xff]
      %v278 = vld [vmem:[%s2 + $0x68] sm:$0xff]
      %v279 = vld [vmem:[%s2 + $0x70] sm:$0xff]
      %v280 = vld [vmem:[%s2 + $0x78] sm:$0xff]
      %v282 = vperm.slane %v248, 0
      %284 = vmatpush.msra.mxu0 %v280
      %285 = vmatpush.msra.mxu0 %v279
      %286 = vmatpush.msra.mxu0 %v278
      %287 = vmatpush.msra.mxu0 %v277
      %288 = vmatpush.msra.mxu0 %v276
      %289 = vmatpush.msra.mxu0 %v275
      %290 = vmatpush.msra.mxu0 %v274
      %291 = vmatpush.msra.mxu0 %v273
      %292 = vmatpush.msra.mxu0 %v272
      %293 = vmatpush.msra.mxu0 %v271
      %294 = vmatpush.msra.mxu0 %v270
      %295 = vmatpush.msra.mxu0 %v269
      %296 = vmatpush.msra.mxu0 %v268
      %297 = vmatpush.msra.mxu0 %v267
      %298 = vmatpush.msra.mxu0 %v266
      %299 = vmatpush.msra.mxu0 %v265
      %300 = vmatmul.f32.gmra.mxu0 %v249
      %v301 = vpop.f32.mrf.mxu0
      %v302 = vadd.f32 %v282, %v301
      %303 = vmatmul.f32.gmra.mxu0 %v250
      %v304 = vpop.f32.mrf.mxu0
      %v305 = vadd.f32 %v282, %v304
      %306 = vmatmul.f32.gmra.mxu0 %v251
      %v307 = vpop.f32.mrf.mxu0
      %v308 = vadd.f32 %v282, %v307
      %309 = vmatmul.f32.gmra.mxu0 %v252
      %v310 = vpop.f32.mrf.mxu0
      %v311 = vadd.f32 %v282, %v310
      %312 = vmatmul.f32.gmra.mxu0 %v253
      %v313 = vpop.f32.mrf.mxu0
      %v314 = vadd.f32 %v282, %v313
      %315 = vmatmul.f32.gmra.mxu0 %v254
      %v316 = vpop.f32.mrf.mxu0
      %v317 = vadd.f32 %v282, %v316
      %318 = vmatmul.f32.gmra.mxu0 %v255
      %v319 = vpop.f32.mrf.mxu0
      %v320 = vadd.f32 %v282, %v319
      %321 = vmatmul.f32.gmra.mxu0 %v256
      %v322 = vpop.f32.mrf.mxu0
      %v323 = vadd.f32 %v282, %v322
      %324 = vmatmul.f32.gmra.mxu0 %v257
      %v325 = vpop.f32.mrf.mxu0
      %v326 = vadd.f32 %v282, %v325
      %327 = vmatmul.f32.gmra.mxu0 %v258
      %v328 = vpop.f32.mrf.mxu0
      %v329 = vadd.f32 %v282, %v328
      %330 = vmatmul.f32.gmra.mxu0 %v259
      %v331 = vpop.f32.mrf.mxu0
      %v332 = vadd.f32 %v282, %v331
      %333 = vmatmul.f32.gmra.mxu0 %v260
      %v334 = vpop.f32.mrf.mxu0
      %v335 = vadd.f32 %v282, %v334
      %336 = vmatmul.f32.gmra.mxu0 %v261
      %v337 = vpop.f32.mrf.mxu0
      %v338 = vadd.f32 %v282, %v337
      %339 = vmatmul.f32.gmra.mxu0 %v262
      %v340 = vpop.f32.mrf.mxu0
      %v341 = vadd.f32 %v282, %v340
      %342 = vmatmul.f32.gmra.mxu0 %v263
      %v343 = vpop.f32.mrf.mxu0
      %v344 = vadd.f32 %v282, %v343
      %345 = vmatmul.f32.gmra.mxu0 %v264
      %v346 = vpop.f32.mrf.mxu0
      %v347 = vadd.f32 %v282, %v346
      %348 = vdwg.mxu0
      %v349 = vld [vmem:[%s243] sm:$0xff]
      %v350 = vld [vmem:[%s243 + $0x8] sm:$0xff]
      %v351 = vld [vmem:[%s243 + $0x10] sm:$0xff]
      %v352 = vld [vmem:[%s243 + $0x18] sm:$0xff]
      %v353 = vld [vmem:[%s243 + $0x20] sm:$0xff]
      %v354 = vld [vmem:[%s243 + $0x28] sm:$0xff]
      %v355 = vld [vmem:[%s243 + $0x30] sm:$0xff]
      %v356 = vld [vmem:[%s243 + $0x38] sm:$0xff]
      %357 = vmatpush.msra.mxu0 %v280
      %358 = vmatpush.msra.mxu0 %v279
      %359 = vmatpush.msra.mxu0 %v278
      %360 = vmatpush.msra.mxu0 %v277
      %361 = vmatpush.msra.mxu0 %v276
      %362 = vmatpush.msra.mxu0 %v275
      %363 = vmatpush.msra.mxu0 %v274
      %364 = vmatpush.msra.mxu0 %v273
      %365 = vmatpush.msra.mxu0 %v272
      %366 = vmatpush.msra.mxu0 %v271
      %367 = vmatpush.msra.mxu0 %v270
      %368 = vmatpush.msra.mxu0 %v269
      %369 = vmatpush.msra.mxu0 %v268
      %370 = vmatpush.msra.mxu0 %v267
      %371 = vmatpush.msra.mxu0 %v266
      %372 = vmatpush.msra.mxu0 %v265
      %373 = vmatmul.f32.gmra.mxu0 %v349
      %v374 = vpop.f32.mrf.mxu0
      %v375 = vadd.f32 %v282, %v374
      %376 = vmatmul.f32.gmra.mxu0 %v350
      %v377 = vpop.f32.mrf.mxu0
      %v378 = vadd.f32 %v282, %v377
      %379 = vmatmul.f32.gmra.mxu0 %v351
      %v380 = vpop.f32.mrf.mxu0
      %v381 = vadd.f32 %v282, %v380
      %382 = vmatmul.f32.gmra.mxu0 %v352
      %v383 = vpop.f32.mrf.mxu0
      %v384 = vadd.f32 %v282, %v383
      %385 = vmatmul.f32.gmra.mxu0 %v353
      %v386 = vpop.f32.mrf.mxu0
      %v387 = vadd.f32 %v282, %v386
      %388 = vmatmul.f32.gmra.mxu0 %v354
      %v389 = vpop.f32.mrf.mxu0
      %v390 = vadd.f32 %v282, %v389
      %391 = vmatmul.f32.gmra.mxu0 %v355
      %v392 = vpop.f32.mrf.mxu0
      %v393 = vadd.f32 %v282, %v392
      %394 = vmatmul.f32.gmra.mxu0 %v356
      %v395 = vpop.f32.mrf.mxu0
      %v396 = vadd.f32 %v282, %v395
      %397 = vdwg.mxu0
      %v398 = vld [vmem:[%s4] sm:$0xff]
      %v399 = vld [vmem:[%s4 + $0x8] sm:$0xff]
      %v400 = vld [vmem:[%s4 + $0x10] sm:$0xff]
      %v401 = vld [vmem:[%s4 + $0x18] sm:$0xff]
      %v402 = vld [vmem:[%s4 + $0x20] sm:$0xff]
      %v403 = vld [vmem:[%s4 + $0x28] sm:$0xff]
      %v404 = vld [vmem:[%s4 + $0x30] sm:$0xff]
      %v405 = vld [vmem:[%s4 + $0x38] sm:$0xff]
      %v406 = vld [vmem:[%s4 + $0x40] sm:$0xff]
      %v407 = vld [vmem:[%s4 + $0x48] sm:$0xff]
      %v408 = vld [vmem:[%s4 + $0x50] sm:$0xff]
      %v409 = vld [vmem:[%s4 + $0x58] sm:$0xff]
      %v410 = vld [vmem:[%s4 + $0x60] sm:$0xff]
      %v411 = vld [vmem:[%s4 + $0x68] sm:$0xff]
      %v412 = vld [vmem:[%s4 + $0x70] sm:$0xff]
      %v413 = vld [vmem:[%s4 + $0x78] sm:$0xff]
      %414 = vmatpush.msra.mxu0 %v413
      %415 = vmatpush.msra.mxu0 %v412
      %416 = vmatpush.msra.mxu0 %v411
      %417 = vmatpush.msra.mxu0 %v410
      %418 = vmatpush.msra.mxu0 %v409
      %419 = vmatpush.msra.mxu0 %v408
      %420 = vmatpush.msra.mxu0 %v407
      %421 = vmatpush.msra.mxu0 %v406
      %422 = vmatpush.msra.mxu0 %v405
      %423 = vmatpush.msra.mxu0 %v404
      %424 = vmatpush.msra.mxu0 %v403
      %425 = vmatpush.msra.mxu0 %v402
      %426 = vmatpush.msra.mxu0 %v401
      %427 = vmatpush.msra.mxu0 %v400
      %428 = vmatpush.msra.mxu0 %v399
      %429 = vmatpush.msra.mxu0 %v398
      %430 = vmatmul.f32.gmra.mxu0 %v302
      %v431 = vpop.f32.mrf.mxu0
      %v432 = vadd.f32 0.0, %v431
      %433 = vmatmul.f32.gmra.mxu0 %v305
      %v434 = vpop.f32.mrf.mxu0
      %v435 = vadd.f32 0.0, %v434
      %436 = vmatmul.f32.gmra.mxu0 %v308
      %v437 = vpop.f32.mrf.mxu0
      %v438 = vadd.f32 0.0, %v437
      %439 = vmatmul.f32.gmra.mxu0 %v311
      %v440 = vpop.f32.mrf.mxu0
      %v441 = vadd.f32 0.0, %v440
      %442 = vmatmul.f32.gmra.mxu0 %v314
      %v443 = vpop.f32.mrf.mxu0
      %v444 = vadd.f32 0.0, %v443
      %445 = vmatmul.f32.gmra.mxu0 %v317
      %v446 = vpop.f32.mrf.mxu0
      %v447 = vadd.f32 0.0, %v446
      %448 = vmatmul.f32.gmra.mxu0 %v320
      %v449 = vpop.f32.mrf.mxu0
      %v450 = vadd.f32 0.0, %v449
      %451 = vmatmul.f32.gmra.mxu0 %v323
      %v452 = vpop.f32.mrf.mxu0
      %v453 = vadd.f32 0.0, %v452
      %454 = vmatmul.f32.gmra.mxu0 %v326
      %v455 = vpop.f32.mrf.mxu0
      %v456 = vadd.f32 0.0, %v455
      %457 = vmatmul.f32.gmra.mxu0 %v329
      %v458 = vpop.f32.mrf.mxu0
      %v459 = vadd.f32 0.0, %v458
      %460 = vmatmul.f32.gmra.mxu0 %v332
      %v461 = vpop.f32.mrf.mxu0
      %v462 = vadd.f32 0.0, %v461
      %463 = vmatmul.f32.gmra.mxu0 %v335
      %v464 = vpop.f32.mrf.mxu0
      %v465 = vadd.f32 0.0, %v464
      %466 = vmatmul.f32.gmra.mxu0 %v338
      %v467 = vpop.f32.mrf.mxu0
      %v468 = vadd.f32 0.0, %v467
      %469 = vmatmul.f32.gmra.mxu0 %v341
      %v470 = vpop.f32.mrf.mxu0
      %v471 = vadd.f32 0.0, %v470
      %472 = vmatmul.f32.gmra.mxu0 %v344
      %v473 = vpop.f32.mrf.mxu0
      %v474 = vadd.f32 0.0, %v473
      %475 = vmatmul.f32.gmra.mxu0 %v347
      %v476 = vpop.f32.mrf.mxu0
      %v477 = vadd.f32 0.0, %v476
      %478 = vdwg.mxu0
      %479 = vmatpush.xpose.msra.mxu0 0.0
      %480 = vmatpush.xpose.msra.mxu0 0.0
      %481 = vmatpush.xpose.msra.mxu0 0.0
      %482 = vmatpush.xpose.msra.mxu0 0.0
      %483 = vmatpush.xpose.msra.mxu0 0.0
      %484 = vmatpush.xpose.msra.mxu0 0.0
      %485 = vmatpush.xpose.msra.mxu0 0.0
      %486 = vmatpush.xpose.msra.mxu0 0.0
      %487 = vmatpush.xpose.msra.mxu0 0.0
      %488 = vmatpush.xpose.msra.mxu0 0.0
      %489 = vmatpush.xpose.msra.mxu0 0.0
      %490 = vmatpush.xpose.msra.mxu0 0.0
      %491 = vmatpush.xpose.msra.mxu0 0.0
      %492 = vmatpush.xpose.msra.mxu0 0.0
      %493 = vmatpush.xpose.msra.mxu0 0.0
      %494 = vmatpush.xpose.msra.mxu0 %v375
      %495 = vmatmul.f32.gmra.mxu0 %v432
      %v496 = vpop.f32.mrf.mxu0
      %v497 = vadd.f32 0.0, %v496
      %498 = vmatmul.f32.gmra.mxu0 %v435
      %v499 = vpop.f32.mrf.mxu0
      %v500 = vadd.f32 0.0, %v499
      %501 = vdwg.mxu0
      %502 = vmatpush.xpose.msra.mxu0 0.0
      %503 = vmatpush.xpose.msra.mxu0 0.0
      %504 = vmatpush.xpose.msra.mxu0 0.0
      %505 = vmatpush.xpose.msra.mxu0 0.0
      %506 = vmatpush.xpose.msra.mxu0 0.0
      %507 = vmatpush.xpose.msra.mxu0 0.0
      %508 = vmatpush.xpose.msra.mxu0 0.0
      %509 = vmatpush.xpose.msra.mxu0 0.0
      %510 = vmatpush.xpose.msra.mxu0 0.0
      %511 = vmatpush.xpose.msra.mxu0 0.0
      %512 = vmatpush.xpose.msra.mxu0 0.0
      %513 = vmatpush.xpose.msra.mxu0 0.0
      %514 = vmatpush.xpose.msra.mxu0 0.0
      %515 = vmatpush.xpose.msra.mxu0 0.0
      %516 = vmatpush.xpose.msra.mxu0 0.0
      %517 = vmatpush.xpose.msra.mxu0 %v378
      %518 = vmatmul.f32.gmra.mxu0 %v438
      %v519 = vpop.f32.mrf.mxu0
      %v520 = vadd.f32 0.0, %v519
      %521 = vmatmul.f32.gmra.mxu0 %v441
      %v522 = vpop.f32.mrf.mxu0
      %v523 = vadd.f32 0.0, %v522
      %524 = vdwg.mxu0
      %525 = vmatpush.xpose.msra.mxu0 0.0
      %526 = vmatpush.xpose.msra.mxu0 0.0
      %527 = vmatpush.xpose.msra.mxu0 0.0
      %528 = vmatpush.xpose.msra.mxu0 0.0
      %529 = vmatpush.xpose.msra.mxu0 0.0
      %530 = vmatpush.xpose.msra.mxu0 0.0
      %531 = vmatpush.xpose.msra.mxu0 0.0
      %532 = vmatpush.xpose.msra.mxu0 0.0
      %533 = vmatpush.xpose.msra.mxu0 0.0
      %534 = vmatpush.xpose.msra.mxu0 0.0
      %535 = vmatpush.xpose.msra.mxu0 0.0
      %536 = vmatpush.xpose.msra.mxu0 0.0
      %537 = vmatpush.xpose.msra.mxu0 0.0
      %538 = vmatpush.xpose.msra.mxu0 0.0
      %539 = vmatpush.xpose.msra.mxu0 0.0
      %540 = vmatpush.xpose.msra.mxu0 %v381
      %541 = vmatmul.f32.gmra.mxu0 %v444
      %v542 = vpop.f32.mrf.mxu0
      %v543 = vadd.f32 0.0, %v542
      %544 = vmatmul.f32.gmra.mxu0 %v447
      %v545 = vpop.f32.mrf.mxu0
      %v546 = vadd.f32 0.0, %v545
      %547 = vdwg.mxu0
      %548 = vmatpush.xpose.msra.mxu0 0.0
      %549 = vmatpush.xpose.msra.mxu0 0.0
      %550 = vmatpush.xpose.msra.mxu0 0.0
      %551 = vmatpush.xpose.msra.mxu0 0.0
      %552 = vmatpush.xpose.msra.mxu0 0.0
      %553 = vmatpush.xpose.msra.mxu0 0.0
      %554 = vmatpush.xpose.msra.mxu0 0.0
      %555 = vmatpush.xpose.msra.mxu0 0.0
      %556 = vmatpush.xpose.msra.mxu0 0.0
      %557 = vmatpush.xpose.msra.mxu0 0.0
      %558 = vmatpush.xpose.msra.mxu0 0.0
      %559 = vmatpush.xpose.msra.mxu0 0.0
      %560 = vmatpush.xpose.msra.mxu0 0.0
      %561 = vmatpush.xpose.msra.mxu0 0.0
      %562 = vmatpush.xpose.msra.mxu0 0.0
      %563 = vmatpush.xpose.msra.mxu0 %v384
      %564 = vmatmul.f32.gmra.mxu0 %v450
      %v565 = vpop.f32.mrf.mxu0
      %v566 = vadd.f32 0.0, %v565
      %567 = vmatmul.f32.gmra.mxu0 %v453
      %v568 = vpop.f32.mrf.mxu0
      %v569 = vadd.f32 0.0, %v568
      %570 = vdwg.mxu0
      %571 = vmatpush.xpose.msra.mxu0 0.0
      %572 = vmatpush.xpose.msra.mxu0 0.0
      %573 = vmatpush.xpose.msra.mxu0 0.0
      %574 = vmatpush.xpose.msra.mxu0 0.0
      %575 = vmatpush.xpose.msra.mxu0 0.0
      %576 = vmatpush.xpose.msra.mxu0 0.0
      %577 = vmatpush.xpose.msra.mxu0 0.0
      %578 = vmatpush.xpose.msra.mxu0 0.0
      %579 = vmatpush.xpose.msra.mxu0 0.0
      %580 = vmatpush.xpose.msra.mxu0 0.0
      %581 = vmatpush.xpose.msra.mxu0 0.0
      %582 = vmatpush.xpose.msra.mxu0 0.0
      %583 = vmatpush.xpose.msra.mxu0 0.0
      %584 = vmatpush.xpose.msra.mxu0 0.0
      %585 = vmatpush.xpose.msra.mxu0 0.0
      %586 = vmatpush.xpose.msra.mxu0 %v387
      %587 = vmatmul.f32.gmra.mxu0 %v456
      %v588 = vpop.f32.mrf.mxu0
      %v589 = vadd.f32 0.0, %v588
      %590 = vmatmul.f32.gmra.mxu0 %v459
      %v591 = vpop.f32.mrf.mxu0
      %v592 = vadd.f32 0.0, %v591
      %593 = vdwg.mxu0
      %594 = vmatpush.xpose.msra.mxu0 0.0
      %595 = vmatpush.xpose.msra.mxu0 0.0
      %596 = vmatpush.xpose.msra.mxu0 0.0
      %597 = vmatpush.xpose.msra.mxu0 0.0
      %598 = vmatpush.xpose.msra.mxu0 0.0
      %599 = vmatpush.xpose.msra.mxu0 0.0
      %600 = vmatpush.xpose.msra.mxu0 0.0
      %601 = vmatpush.xpose.msra.mxu0 0.0
      %602 = vmatpush.xpose.msra.mxu0 0.0
      %603 = vmatpush.xpose.msra.mxu0 0.0
      %604 = vmatpush.xpose.msra.mxu0 0.0
      %605 = vmatpush.xpose.msra.mxu0 0.0
      %606 = vmatpush.xpose.msra.mxu0 0.0
      %607 = vmatpush.xpose.msra.mxu0 0.0
      %608 = vmatpush.xpose.msra.mxu0 0.0
      %609 = vmatpush.xpose.msra.mxu0 %v390
      %610 = vmatmul.f32.gmra.mxu0 %v462
      %v611 = vpop.f32.mrf.mxu0
      %v612 = vadd.f32 0.0, %v611
      %613 = vmatmul.f32.gmra.mxu0 %v465
      %v614 = vpop.f32.mrf.mxu0
      %v615 = vadd.f32 0.0, %v614
      %616 = vdwg.mxu0
      %617 = vmatpush.xpose.msra.mxu0 0.0
      %618 = vmatpush.xpose.msra.mxu0 0.0
      %619 = vmatpush.xpose.msra.mxu0 0.0
      %620 = vmatpush.xpose.msra.mxu0 0.0
      %621 = vmatpush.xpose.msra.mxu0 0.0
      %622 = vmatpush.xpose.msra.mxu0 0.0
      %623 = vmatpush.xpose.msra.mxu0 0.0
      %624 = vmatpush.xpose.msra.mxu0 0.0
      %625 = vmatpush.xpose.msra.mxu0 0.0
      %626 = vmatpush.xpose.msra.mxu0 0.0
      %627 = vmatpush.xpose.msra.mxu0 0.0
      %628 = vmatpush.xpose.msra.mxu0 0.0
      %629 = vmatpush.xpose.msra.mxu0 0.0
      %630 = vmatpush.xpose.msra.mxu0 0.0
      %631 = vmatpush.xpose.msra.mxu0 0.0
      %632 = vmatpush.xpose.msra.mxu0 %v393
      %633 = vmatmul.f32.gmra.mxu0 %v468
      %v634 = vpop.f32.mrf.mxu0
      %v635 = vadd.f32 0.0, %v634
      %636 = vmatmul.f32.gmra.mxu0 %v471
      %v637 = vpop.f32.mrf.mxu0
      %v638 = vadd.f32 0.0, %v637
      %639 = vdwg.mxu0
      %640 = vmatpush.xpose.msra.mxu0 0.0
      %641 = vmatpush.xpose.msra.mxu0 0.0
      %642 = vmatpush.xpose.msra.mxu0 0.0
      %643 = vmatpush.xpose.msra.mxu0 0.0
      %644 = vmatpush.xpose.msra.mxu0 0.0
      %645 = vmatpush.xpose.msra.mxu0 0.0
      %646 = vmatpush.xpose.msra.mxu0 0.0
      %647 = vmatpush.xpose.msra.mxu0 0.0
      %648 = vmatpush.xpose.msra.mxu0 0.0
      %649 = vmatpush.xpose.msra.mxu0 0.0
      %650 = vmatpush.xpose.msra.mxu0 0.0
      %651 = vmatpush.xpose.msra.mxu0 0.0
      %652 = vmatpush.xpose.msra.mxu0 0.0
      %653 = vmatpush.xpose.msra.mxu0 0.0
      %654 = vmatpush.xpose.msra.mxu0 0.0
      %655 = vmatpush.xpose.msra.mxu0 %v396
      %656 = vmatmul.f32.gmra.mxu0 %v474
      %v657 = vpop.f32.mrf.mxu0
      %v658 = vadd.f32 0.0, %v657
      %659 = vmatmul.f32.gmra.mxu0 %v477
      %v660 = vpop.f32.mrf.mxu0
      %v661 = vadd.f32 0.0, %v660
      %662 = vdwg.mxu0
      %v663 = vtanh.pop %v497
      %v664 = vtanh.pop %v500
      %v665 = vtanh.pop %v520
      %v666 = vtanh.pop %v523
      %v667 = vtanh.pop %v543
      %v668 = vtanh.pop %v546
      %v669 = vtanh.pop %v566
      %v670 = vtanh.pop %v569
      %v671 = vtanh.pop %v589
      %v672 = vtanh.pop %v592
      %v673 = vtanh.pop %v612
      %v674 = vtanh.pop %v615
      %v675 = vtanh.pop %v635
      %v676 = vtanh.pop %v638
      %v677 = vtanh.pop %v658
      %v678 = vtanh.pop %v661
      %vm679 = vcmask 64512
      %v680 = vsel %vm679, %v663, -inf
      %681 = vmax.xlane.f32.xlu0 %v680
      %v682 = vpop.xlane.xlu0 %681
      %v683 = vsel %vm679, %v664, -inf
      %684 = vmax.xlane.f32.xlu0 %v683
      %v685 = vpop.xlane.xlu0 %684
      %v686 = vsel %vm679, %v665, -inf
      %687 = vmax.xlane.f32.xlu0 %v686
      %v688 = vpop.xlane.xlu0 %687
      %v689 = vsel %vm679, %v666, -inf
      %690 = vmax.xlane.f32.xlu0 %v689
      %v691 = vpop.xlane.xlu0 %690
      %v692 = vsel %vm679, %v667, -inf
      %693 = vmax.xlane.f32.xlu0 %v692
      %v694 = vpop.xlane.xlu0 %693
      %v695 = vsel %vm679, %v668, -inf
      %696 = vmax.xlane.f32.xlu0 %v695
      %v697 = vpop.xlane.xlu0 %696
      %v698 = vsel %vm679, %v669, -inf
      %699 = vmax.xlane.f32.xlu0 %v698
      %v700 = vpop.xlane.xlu0 %699
      %v701 = vsel %vm679, %v670, -inf
      %702 = vmax.xlane.f32.xlu0 %v701
      %v703 = vpop.xlane.xlu0 %702
      %v704 = vsel %vm679, %v671, -inf
      %705 = vmax.xlane.f32.xlu0 %v704
      %v706 = vpop.xlane.xlu0 %705
      %v707 = vsel %vm679, %v672, -inf
      %708 = vmax.xlane.f32.xlu0 %v707
      %v709 = vpop.xlane.xlu0 %708
      %v710 = vsel %vm679, %v673, -inf
      %711 = vmax.xlane.f32.xlu0 %v710
      %v712 = vpop.xlane.xlu0 %711
      %v713 = vsel %vm679, %v674, -inf
      %714 = vmax.xlane.f32.xlu0 %v713
      %v715 = vpop.xlane.xlu0 %714
      %v716 = vsel %vm679, %v675, -inf
      %717 = vmax.xlane.f32.xlu0 %v716
      %v718 = vpop.xlane.xlu0 %717
      %v719 = vsel %vm679, %v676, -inf
      %720 = vmax.xlane.f32.xlu0 %v719
      %v721 = vpop.xlane.xlu0 %720
      %v722 = vsel %vm679, %v677, -inf
      %723 = vmax.xlane.f32.xlu0 %v722
      %v724 = vpop.xlane.xlu0 %723
      %v725 = vsel %vm679, %v678, -inf
      %726 = vmax.xlane.f32.xlu0 %v725
      %v727 = vpop.xlane.xlu0 %726
      %v728 = vmax.f32 %v682, %v685
      %v729 = vrot.slane %v728, 4
      %v730 = vmax.f32 %v728, %v729
      %v731 = vrot.slane %v730, 2
      %v732 = vmax.f32 %v730, %v731
      %v733 = vrot.slane %v732, 1
      %v734 = vmax.f32 %v732, %v733
      %v735 = vmax.f32 %v688, %v691
      %v736 = vrot.slane %v735, 4
      %v737 = vmax.f32 %v735, %v736
      %v738 = vrot.slane %v737, 2
      %v739 = vmax.f32 %v737, %v738
      %v740 = vrot.slane %v739, 1
      %v741 = vmax.f32 %v739, %v740
      %v742 = vmax.f32 %v694, %v697
      %v743 = vrot.slane %v742, 4
      %v744 = vmax.f32 %v742, %v743
      %v745 = vrot.slane %v744, 2
      %v746 = vmax.f32 %v744, %v745
      %v747 = vrot.slane %v746, 1
      %v748 = vmax.f32 %v746, %v747
      %v749 = vmax.f32 %v700, %v703
      %v750 = vrot.slane %v749, 4
      %v751 = vmax.f32 %v749, %v750
      %v752 = vrot.slane %v751, 2
      %v753 = vmax.f32 %v751, %v752
      %v754 = vrot.slane %v753, 1
      %v755 = vmax.f32 %v753, %v754
      %v756 = vmax.f32 %v706, %v709
      %v757 = vrot.slane %v756, 4
      %v758 = vmax.f32 %v756, %v757
      %v759 = vrot.slane %v758, 2
      %v760 = vmax.f32 %v758, %v759
      %v761 = vrot.slane %v760, 1
      %v762 = vmax.f32 %v760, %v761
      %v763 = vmax.f32 %v712, %v715
      %v764 = vrot.slane %v763, 4
      %v765 = vmax.f32 %v763, %v764
      %v766 = vrot.slane %v765, 2
      %v767 = vmax.f32 %v765, %v766
      %v768 = vrot.slane %v767, 1
      %v769 = vmax.f32 %v767, %v768
      %v770 = vmax.f32 %v718, %v721
      %v771 = vrot.slane %v770, 4
      %v772 = vmax.f32 %v770, %v771
      %v773 = vrot.slane %v772, 2
      %v774 = vmax.f32 %v772, %v773
      %v775 = vrot.slane %v774, 1
      %v776 = vmax.f32 %v774, %v775
      %v777 = vmax.f32 %v724, %v727
      %v778 = vrot.slane %v777, 4
      %v779 = vmax.f32 %v777, %v778
      %v780 = vrot.slane %v779, 2
      %v781 = vmax.f32 %v779, %v780
      %v782 = vrot.slane %v781, 1
      %v783 = vmax.f32 %v781, %v782
      %v784 = vsub.f32 %v682, %v734
      %v785 = vsub.f32 %v685, %v734
      %v786 = vsub.f32 %v688, %v741
      %v787 = vsub.f32 %v691, %v741
      %v788 = vsub.f32 %v694, %v748
      %v789 = vsub.f32 %v697, %v748
      %v790 = vsub.f32 %v700, %v755
      %v791 = vsub.f32 %v703, %v755
      %v792 = vsub.f32 %v706, %v762
      %v793 = vsub.f32 %v709, %v762
      %v794 = vsub.f32 %v712, %v769
      %v795 = vsub.f32 %v715, %v769
      %v796 = vsub.f32 %v718, %v776
      %v797 = vsub.f32 %v721, %v776
      %v798 = vsub.f32 %v724, %v783
      %v799 = vsub.f32 %v727, %v783
      %v800 = vmul.f32 %v784, 1.442695
      %v801 = vpow.pop %v800
      %v802 = vmul.f32 %v785, 1.442695
      %v803 = vpow.pop %v802
      %v804 = vmul.f32 %v786, 1.442695
      %v805 = vpow.pop %v804
      %v806 = vmul.f32 %v787, 1.442695
      %v807 = vpow.pop %v806
      %v808 = vmul.f32 %v788, 1.442695
      %v809 = vpow.pop %v808
      %v810 = vmul.f32 %v789, 1.442695
      %v811 = vpow.pop %v810
      %v812 = vmul.f32 %v790, 1.442695
      %v813 = vpow.pop %v812
      %v814 = vmul.f32 %v791, 1.442695
      %v815 = vpow.pop %v814
      %v816 = vmul.f32 %v792, 1.442695
      %v817 = vpow.pop %v816
      %v818 = vmul.f32 %v793, 1.442695
      %v819 = vpow.pop %v818
      %v820 = vmul.f32 %v794, 1.442695
      %v821 = vpow.pop %v820
      %v822 = vmul.f32 %v795, 1.442695
      %v823 = vpow.pop %v822
      %v824 = vmul.f32 %v796, 1.442695
      %v825 = vpow.pop %v824
      %v826 = vmul.f32 %v797, 1.442695
      %v827 = vpow.pop %v826
      %v828 = vmul.f32 %v798, 1.442695
      %v829 = vpow.pop %v828
      %v830 = vmul.f32 %v799, 1.442695
      %v831 = vpow.pop %v830
      %v832 = vadd.f32 %v801, %v803
      %v833 = vrot.slane %v832, 4
      %v834 = vadd.f32 %v832, %v833
      %v835 = vrot.slane %v834, 2
      %v836 = vadd.f32 %v834, %v835
      %v837 = vrot.slane %v836, 1
      %v838 = vadd.f32 %v836, %v837
      %v839 = vadd.f32 %v805, %v807
      %v840 = vrot.slane %v839, 4
      %v841 = vadd.f32 %v839, %v840
      %v842 = vrot.slane %v841, 2
      %v843 = vadd.f32 %v841, %v842
      %v844 = vrot.slane %v843, 1
      %v845 = vadd.f32 %v843, %v844
      %v846 = vadd.f32 %v809, %v811
      %v847 = vrot.slane %v846, 4
      %v848 = vadd.f32 %v846, %v847
      %v849 = vrot.slane %v848, 2
      %v850 = vadd.f32 %v848, %v849
      %v851 = vrot.slane %v850, 1
      %v852 = vadd.f32 %v850, %v851
      %v853 = vadd.f32 %v813, %v815
      %v854 = vrot.slane %v853, 4
      %v855 = vadd.f32 %v853, %v854
      %v856 = vrot.slane %v855, 2
      %v857 = vadd.f32 %v855, %v856
      %v858 = vrot.slane %v857, 1
      %v859 = vadd.f32 %v857, %v858
      %v860 = vadd.f32 %v817, %v819
      %v861 = vrot.slane %v860, 4
      %v862 = vadd.f32 %v860, %v861
      %v863 = vrot.slane %v862, 2
      %v864 = vadd.f32 %v862, %v863
      %v865 = vrot.slane %v864, 1
      %v866 = vadd.f32 %v864, %v865
      %v867 = vadd.f32 %v821, %v823
      %v868 = vrot.slane %v867, 4
      %v869 = vadd.f32 %v867, %v868
      %v870 = vrot.slane %v869, 2
      %v871 = vadd.f32 %v869, %v870
      %v872 = vrot.slane %v871, 1
      %v873 = vadd.f32 %v871, %v872
      %v874 = vadd.f32 %v825, %v827
      %v875 = vrot.slane %v874, 4
      %v876 = vadd.f32 %v874, %v875
      %v877 = vrot.slane %v876, 2
      %v878 = vadd.f32 %v876, %v877
      %v879 = vrot.slane %v878, 1
      %v880 = vadd.f32 %v878, %v879
      %v881 = vadd.f32 %v829, %v831
      %v882 = vrot.slane %v881, 4
      %v883 = vadd.f32 %v881, %v882
      %v884 = vrot.slane %v883, 2
      %v885 = vadd.f32 %v883, %v884
      %v886 = vrot.slane %v885, 1
      %v887 = vadd.f32 %v885, %v886
      %v888 = vrcp.pop %v838
      %v889 = vrcp.pop %v845
      %v890 = vrcp.pop %v852
      %v891 = vrcp.pop %v859
      %v892 = vrcp.pop %v866
      %v893 = vrcp.pop %v873
      %v894 = vrcp.pop %v880
      %v895 = vrcp.pop %v887
      %v896 = vmul.f32 %v801, %v888
      %v897 = vmul.f32 %v803, %v888
      %v898 = vmul.f32 %v805, %v889
      %v899 = vmul.f32 %v807, %v889
      %v900 = vmul.f32 %v809, %v890
      %v901 = vmul.f32 %v811, %v890
      %v902 = vmul.f32 %v813, %v891
      %v903 = vmul.f32 %v815, %v891
      %v904 = vmul.f32 %v817, %v892
      %v905 = vmul.f32 %v819, %v892
      %v906 = vmul.f32 %v821, %v893
      %v907 = vmul.f32 %v823, %v893
      %v908 = vmul.f32 %v825, %v894
      %v909 = vmul.f32 %v827, %v894
      %v910 = vmul.f32 %v829, %v895
      %v911 = vmul.f32 %v831, %v895
      %v912 = vmax.f32 %v680, %v683
      %v913 = vrot.slane %v912, 4
      %v914 = vmax.f32 %v912, %v913
      %v915 = vrot.slane %v914, 2
      %v916 = vmax.f32 %v914, %v915
      %v917 = vrot.slane %v916, 1
      %v918 = vmax.f32 %v916, %v917
      %v919 = vmax.f32 %v686, %v689
      %v920 = vrot.slane %v919, 4
      %v921 = vmax.f32 %v919, %v920
      %v922 = vrot.slane %v921, 2
      %v923 = vmax.f32 %v921, %v922
      %v924 = vrot.slane %v923, 1
      %v925 = vmax.f32 %v923, %v924
      %v926 = vmax.f32 %v692, %v695
      %v927 = vrot.slane %v926, 4
      %v928 = vmax.f32 %v926, %v927
      %v929 = vrot.slane %v928, 2
      %v930 = vmax.f32 %v928, %v929
      %v931 = vrot.slane %v930, 1
      %v932 = vmax.f32 %v930, %v931
      %v933 = vmax.f32 %v698, %v701
      %v934 = vrot.slane %v933, 4
      %v935 = vmax.f32 %v933, %v934
      %v936 = vrot.slane %v935, 2
      %v937 = vmax.f32 %v935, %v936
      %v938 = vrot.slane %v937, 1
      %v939 = vmax.f32 %v937, %v938
      %v940 = vmax.f32 %v704, %v707
      %v941 = vrot.slane %v940, 4
      %v942 = vmax.f32 %v940, %v941
      %v943 = vrot.slane %v942, 2
      %v944 = vmax.f32 %v942, %v943
      %v945 = vrot.slane %v944, 1
      %v946 = vmax.f32 %v944, %v945
      %v947 = vmax.f32 %v710, %v713
      %v948 = vrot.slane %v947, 4
      %v949 = vmax.f32 %v947, %v948
      %v950 = vrot.slane %v949, 2
      %v951 = vmax.f32 %v949, %v950
      %v952 = vrot.slane %v951, 1
      %v953 = vmax.f32 %v951, %v952
      %v954 = vmax.f32 %v716, %v719
      %v955 = vrot.slane %v954, 4
      %v956 = vmax.f32 %v954, %v955
      %v957 = vrot.slane %v956, 2
      %v958 = vmax.f32 %v956, %v957
      %v959 = vrot.slane %v958, 1
      %v960 = vmax.f32 %v958, %v959
      %v961 = vmax.f32 %v722, %v725
      %v962 = vrot.slane %v961, 4
      %v963 = vmax.f32 %v961, %v962
      %v964 = vrot.slane %v963, 2
      %v965 = vmax.f32 %v963, %v964
      %v966 = vrot.slane %v965, 1
      %v967 = vmax.f32 %v965, %v966
      %v968 = vsel %vm679, %v918, -inf
      %969 = vmax.xlane.f32.xlu0 %v968
      %v970 = vpop.xlane.xlu0 %969
      %v971 = vsel %vm679, %v925, -inf
      %972 = vmax.xlane.f32.xlu0 %v971
      %v973 = vpop.xlane.xlu0 %972
      %v974 = vsel %vm679, %v932, -inf
      %975 = vmax.xlane.f32.xlu0 %v974
      %v976 = vpop.xlane.xlu0 %975
      %v977 = vsel %vm679, %v939, -inf
      %978 = vmax.xlane.f32.xlu0 %v977
      %v979 = vpop.xlane.xlu0 %978
      %v980 = vsel %vm679, %v946, -inf
      %981 = vmax.xlane.f32.xlu0 %v980
      %v982 = vpop.xlane.xlu0 %981
      %v983 = vsel %vm679, %v953, -inf
      %984 = vmax.xlane.f32.xlu0 %v983
      %v985 = vpop.xlane.xlu0 %984
      %v986 = vsel %vm679, %v960, -inf
      %987 = vmax.xlane.f32.xlu0 %v986
      %v988 = vpop.xlane.xlu0 %987
      %v989 = vsel %vm679, %v967, -inf
      %990 = vmax.xlane.f32.xlu0 %v989
      %v991 = vpop.xlane.xlu0 %990
      %v992 = vsub.f32 %v918, %v970
      %v993 = vsub.f32 %v925, %v973
      %v994 = vsub.f32 %v932, %v976
      %v995 = vsub.f32 %v939, %v979
      %v996 = vsub.f32 %v946, %v982
      %v997 = vsub.f32 %v953, %v985
      %v998 = vsub.f32 %v960, %v988
      %v999 = vsub.f32 %v967, %v991
      %v1000 = vmul.f32 %v992, 1.442695
      %v1001 = vpow.pop %v1000
      %v1002 = vmul.f32 %v993, 1.442695
      %v1003 = vpow.pop %v1002
      %v1004 = vmul.f32 %v994, 1.442695
      %v1005 = vpow.pop %v1004
      %v1006 = vmul.f32 %v995, 1.442695
      %v1007 = vpow.pop %v1006
      %v1008 = vmul.f32 %v996, 1.442695
      %v1009 = vpow.pop %v1008
      %v1010 = vmul.f32 %v997, 1.442695
      %v1011 = vpow.pop %v1010
      %v1012 = vmul.f32 %v998, 1.442695
      %v1013 = vpow.pop %v1012
      %v1014 = vmul.f32 %v999, 1.442695
      %v1015 = vpow.pop %v1014
      %v1016 = vsel %vm679, %v1001, 0.0
      %1017 = vadd.xlane.f32.xlu0 %v1016
      %v1018 = vpop.xlane.xlu0 %1017
      %v1019 = vsel %vm679, %v1003, 0.0
      %1020 = vadd.xlane.f32.xlu0 %v1019
      %v1021 = vpop.xlane.xlu0 %1020
      %v1022 = vsel %vm679, %v1005, 0.0
      %1023 = vadd.xlane.f32.xlu0 %v1022
      %v1024 = vpop.xlane.xlu0 %1023
      %v1025 = vsel %vm679, %v1007, 0.0
      %1026 = vadd.xlane.f32.xlu0 %v1025
      %v1027 = vpop.xlane.xlu0 %1026
      %v1028 = vsel %vm679, %v1009, 0.0
      %1029 = vadd.xlane.f32.xlu0 %v1028
      %v1030 = vpop.xlane.xlu0 %1029
      %v1031 = vsel %vm679, %v1011, 0.0
      %1032 = vadd.xlane.f32.xlu0 %v1031
      %v1033 = vpop.xlane.xlu0 %1032
      %v1034 = vsel %vm679, %v1013, 0.0
      %1035 = vadd.xlane.f32.xlu0 %v1034
      %v1036 = vpop.xlane.xlu0 %1035
      %v1037 = vsel %vm679, %v1015, 0.0
      %1038 = vadd.xlane.f32.xlu0 %v1037
      %v1039 = vpop.xlane.xlu0 %1038
      %v1040 = vrcp.pop %v1018
      %v1041 = vrcp.pop %v1021
      %v1042 = vrcp.pop %v1024
      %v1043 = vrcp.pop %v1027
      %v1044 = vrcp.pop %v1030
      %v1045 = vrcp.pop %v1033
      %v1046 = vrcp.pop %v1036
      %v1047 = vrcp.pop %v1039
      %v1048 = vmul.f32 %v1001, %v1040
      %v1049 = vmul.f32 %v1003, %v1041
      %v1050 = vmul.f32 %v1005, %v1042
      %v1051 = vmul.f32 %v1007, %v1043
      %v1052 = vmul.f32 %v1009, %v1044
      %v1053 = vmul.f32 %v1011, %v1045
      %v1054 = vmul.f32 %v1013, %v1046
      %v1055 = vmul.f32 %v1015, %v1047
      %v1056 = vmul.f32 %v896, %v302
      %v1057 = vmul.f32 %v897, %v305
      %v1058 = vmul.f32 %v898, %v308
      %v1059 = vmul.f32 %v899, %v311
      %v1060 = vmul.f32 %v900, %v314
      %v1061 = vmul.f32 %v901, %v317
      %v1062 = vmul.f32 %v902, %v320
      %v1063 = vmul.f32 %v903, %v323
      %v1064 = vmul.f32 %v904, %v326
      %v1065 = vmul.f32 %v905, %v329
      %v1066 = vmul.f32 %v906, %v332
      %v1067 = vmul.f32 %v907, %v335
      %v1068 = vmul.f32 %v908, %v338
      %v1069 = vmul.f32 %v909, %v341
      %v1070 = vmul.f32 %v910, %v344
      %v1071 = vmul.f32 %v911, %v347
      %v1072 = vadd.f32 %v1056, %v1057
      %v1073 = vrot.slane %v1072, 4
      %v1074 = vadd.f32 %v1072, %v1073
      %v1075 = vrot.slane %v1074, 2
      %v1076 = vadd.f32 %v1074, %v1075
      %v1077 = vrot.slane %v1076, 1
      %v1078 = vadd.f32 %v1076, %v1077
      %v1079 = vadd.f32 %v1058, %v1059
      %v1080 = vrot.slane %v1079, 4
      %v1081 = vadd.f32 %v1079, %v1080
      %v1082 = vrot.slane %v1081, 2
      %v1083 = vadd.f32 %v1081, %v1082
      %v1084 = vrot.slane %v1083, 1
      %v1085 = vadd.f32 %v1083, %v1084
      %v1086 = vadd.f32 %v1060, %v1061
      %v1087 = vrot.slane %v1086, 4
      %v1088 = vadd.f32 %v1086, %v1087
      %v1089 = vrot.slane %v1088, 2
      %v1090 = vadd.f32 %v1088, %v1089
      %v1091 = vrot.slane %v1090, 1
      %v1092 = vadd.f32 %v1090, %v1091
      %v1093 = vadd.f32 %v1062, %v1063
      %v1094 = vrot.slane %v1093, 4
      %v1095 = vadd.f32 %v1093, %v1094
      %v1096 = vrot.slane %v1095, 2
      %v1097 = vadd.f32 %v1095, %v1096
      %v1098 = vrot.slane %v1097, 1
      %v1099 = vadd.f32 %v1097, %v1098
      %v1100 = vadd.f32 %v1064, %v1065
      %v1101 = vrot.slane %v1100, 4
      %v1102 = vadd.f32 %v1100, %v1101
      %v1103 = vrot.slane %v1102, 2
      %v1104 = vadd.f32 %v1102, %v1103
      %v1105 = vrot.slane %v1104, 1
      %v1106 = vadd.f32 %v1104, %v1105
      %v1107 = vadd.f32 %v1066, %v1067
      %v1108 = vrot.slane %v1107, 4
      %v1109 = vadd.f32 %v1107, %v1108
      %v1110 = vrot.slane %v1109, 2
      %v1111 = vadd.f32 %v1109, %v1110
      %v1112 = vrot.slane %v1111, 1
      %v1113 = vadd.f32 %v1111, %v1112
      %v1114 = vadd.f32 %v1068, %v1069
      %v1115 = vrot.slane %v1114, 4
      %v1116 = vadd.f32 %v1114, %v1115
      %v1117 = vrot.slane %v1116, 2
      %v1118 = vadd.f32 %v1116, %v1117
      %v1119 = vrot.slane %v1118, 1
      %v1120 = vadd.f32 %v1118, %v1119
      %v1121 = vadd.f32 %v1070, %v1071
      %v1122 = vrot.slane %v1121, 4
      %v1123 = vadd.f32 %v1121, %v1122
      %v1124 = vrot.slane %v1123, 2
      %v1125 = vadd.f32 %v1123, %v1124
      %v1126 = vrot.slane %v1125, 1
      %v1127 = vadd.f32 %v1125, %v1126
      %v1129 = vsel %vm679, %v1048, 0
      %1131 = vmatpush.msra.mxu0 0.0
      %1132 = vmatpush.msra.mxu0 0.0
      %1133 = vmatpush.msra.mxu0 0.0
      %1134 = vmatpush.msra.mxu0 0.0
      %1135 = vmatpush.msra.mxu0 0.0
      %1136 = vmatpush.msra.mxu0 0.0
      %1137 = vmatpush.msra.mxu0 0.0
      %1138 = vmatpush.msra.mxu0 0.0
      %1139 = vmatpush.msra.mxu0 0.0
      %1140 = vmatpush.msra.mxu0 0.0
      %1141 = vmatpush.msra.mxu0 0.0
      %1142 = vmatpush.msra.mxu0 0.0
      %1143 = vmatpush.msra.mxu0 0.0
      %1144 = vmatpush.msra.mxu0 0.0
      %1145 = vmatpush.msra.mxu0 0.0
      %1146 = vmatpush.msra.mxu0 %v375
      %1147 = vmatmul.f32.gmra.mxu0 %v1129
      %v1148 = vpop.f32.mrf.mxu0
      %v1149 = vadd.f32 0.0, %v1148
      %1150 = vdwg.mxu0
      %v1152 = vsel %vm679, %v1049, 0
      %1154 = vmatpush.msra.mxu0 0.0
      %1155 = vmatpush.msra.mxu0 0.0
      %1156 = vmatpush.msra.mxu0 0.0
      %1157 = vmatpush.msra.mxu0 0.0
      %1158 = vmatpush.msra.mxu0 0.0
      %1159 = vmatpush.msra.mxu0 0.0
      %1160 = vmatpush.msra.mxu0 0.0
      %1161 = vmatpush.msra.mxu0 0.0
      %1162 = vmatpush.msra.mxu0 0.0
      %1163 = vmatpush.msra.mxu0 0.0
      %1164 = vmatpush.msra.mxu0 0.0
      %1165 = vmatpush.msra.mxu0 0.0
      %1166 = vmatpush.msra.mxu0 0.0
      %1167 = vmatpush.msra.mxu0 0.0
      %1168 = vmatpush.msra.mxu0 0.0
      %1169 = vmatpush.msra.mxu0 %v378
      %1170 = vmatmul.f32.gmra.mxu0 %v1152
      %v1171 = vpop.f32.mrf.mxu0
      %v1172 = vadd.f32 0.0, %v1171
      %1173 = vdwg.mxu0
      %v1175 = vsel %vm679, %v1050, 0
      %1177 = vmatpush.msra.mxu0 0.0
      %1178 = vmatpush.msra.mxu0 0.0
      %1179 = vmatpush.msra.mxu0 0.0
      %1180 = vmatpush.msra.mxu0 0.0
      %1181 = vmatpush.msra.mxu0 0.0
      %1182 = vmatpush.msra.mxu0 0.0
      %1183 = vmatpush.msra.mxu0 0.0
      %1184 = vmatpush.msra.mxu0 0.0
      %1185 = vmatpush.msra.mxu0 0.0
      %1186 = vmatpush.msra.mxu0 0.0
      %1187 = vmatpush.msra.mxu0 0.0
      %1188 = vmatpush.msra.mxu0 0.0
      %1189 = vmatpush.msra.mxu0 0.0
      %1190 = vmatpush.msra.mxu0 0.0
      %1191 = vmatpush.msra.mxu0 0.0
      %1192 = vmatpush.msra.mxu0 %v381
      %1193 = vmatmul.f32.gmra.mxu0 %v1175
      %v1194 = vpop.f32.mrf.mxu0
      %v1195 = vadd.f32 0.0, %v1194
      %1196 = vdwg.mxu0
      %v1198 = vsel %vm679, %v1051, 0
      %1200 = vmatpush.msra.mxu0 0.0
      %1201 = vmatpush.msra.mxu0 0.0
      %1202 = vmatpush.msra.mxu0 0.0
      %1203 = vmatpush.msra.mxu0 0.0
      %1204 = vmatpush.msra.mxu0 0.0
      %1205 = vmatpush.msra.mxu0 0.0
      %1206 = vmatpush.msra.mxu0 0.0
      %1207 = vmatpush.msra.mxu0 0.0
      %1208 = vmatpush.msra.mxu0 0.0
      %1209 = vmatpush.msra.mxu0 0.0
      %1210 = vmatpush.msra.mxu0 0.0
      %1211 = vmatpush.msra.mxu0 0.0
      %1212 = vmatpush.msra.mxu0 0.0
      %1213 = vmatpush.msra.mxu0 0.0
      %1214 = vmatpush.msra.mxu0 0.0
      %1215 = vmatpush.msra.mxu0 %v384
      %1216 = vmatmul.f32.gmra.mxu0 %v1198
      %v1217 = vpop.f32.mrf.mxu0
      %v1218 = vadd.f32 0.0, %v1217
      %1219 = vdwg.mxu0
      %v1221 = vsel %vm679, %v1052, 0
      %1223 = vmatpush.msra.mxu0 0.0
      %1224 = vmatpush.msra.mxu0 0.0
      %1225 = vmatpush.msra.mxu0 0.0
      %1226 = vmatpush.msra.mxu0 0.0
      %1227 = vmatpush.msra.mxu0 0.0
      %1228 = vmatpush.msra.mxu0 0.0
      %1229 = vmatpush.msra.mxu0 0.0
      %1230 = vmatpush.msra.mxu0 0.0
      %1231 = vmatpush.msra.mxu0 0.0
      %1232 = vmatpush.msra.mxu0 0.0
      %1233 = vmatpush.msra.mxu0 0.0
      %1234 = vmatpush.msra.mxu0 0.0
      %1235 = vmatpush.msra.mxu0 0.0
      %1236 = vmatpush.msra.mxu0 0.0
      %1237 = vmatpush.msra.mxu0 0.0
      %1238 = vmatpush.msra.mxu0 %v387
      %1239 = vmatmul.f32.gmra.mxu0 %v1221
      %v1240 = vpop.f32.mrf.mxu0
      %v1241 = vadd.f32 0.0, %v1240
      %1242 = vdwg.mxu0
      %v1244 = vsel %vm679, %v1053, 0
      %1246 = vmatpush.msra.mxu0 0.0
      %1247 = vmatpush.msra.mxu0 0.0
      %1248 = vmatpush.msra.mxu0 0.0
      %1249 = vmatpush.msra.mxu0 0.0
      %1250 = vmatpush.msra.mxu0 0.0
      %1251 = vmatpush.msra.mxu0 0.0
      %1252 = vmatpush.msra.mxu0 0.0
      %1253 = vmatpush.msra.mxu0 0.0
      %1254 = vmatpush.msra.mxu0 0.0
      %1255 = vmatpush.msra.mxu0 0.0
      %1256 = vmatpush.msra.mxu0 0.0
      %1257 = vmatpush.msra.mxu0 0.0
      %1258 = vmatpush.msra.mxu0 0.0
      %1259 = vmatpush.msra.mxu0 0.0
      %1260 = vmatpush.msra.mxu0 0.0
      %1261 = vmatpush.msra.mxu0 %v390
      %1262 = vmatmul.f32.gmra.mxu0 %v1244
      %v1263 = vpop.f32.mrf.mxu0
      %v1264 = vadd.f32 0.0, %v1263
      %1265 = vdwg.mxu0
      %v1267 = vsel %vm679, %v1054, 0
      %1269 = vmatpush.msra.mxu0 0.0
      %1270 = vmatpush.msra.mxu0 0.0
      %1271 = vmatpush.msra.mxu0 0.0
      %1272 = vmatpush.msra.mxu0 0.0
      %1273 = vmatpush.msra.mxu0 0.0
      %1274 = vmatpush.msra.mxu0 0.0
      %1275 = vmatpush.msra.mxu0 0.0
      %1276 = vmatpush.msra.mxu0 0.0
      %1277 = vmatpush.msra.mxu0 0.0
      %1278 = vmatpush.msra.mxu0 0.0
      %1279 = vmatpush.msra.mxu0 0.0
      %1280 = vmatpush.msra.mxu0 0.0
      %1281 = vmatpush.msra.mxu0 0.0
      %1282 = vmatpush.msra.mxu0 0.0
      %1283 = vmatpush.msra.mxu0 0.0
      %1284 = vmatpush.msra.mxu0 %v393
      %1285 = vmatmul.f32.gmra.mxu0 %v1267
      %v1286 = vpop.f32.mrf.mxu0
      %v1287 = vadd.f32 0.0, %v1286
      %1288 = vdwg.mxu0
      %v1290 = vsel %vm679, %v1055, 0
      %1292 = vmatpush.msra.mxu0 0.0
      %1293 = vmatpush.msra.mxu0 0.0
      %1294 = vmatpush.msra.mxu0 0.0
      %1295 = vmatpush.msra.mxu0 0.0
      %1296 = vmatpush.msra.mxu0 0.0
      %1297 = vmatpush.msra.mxu0 0.0
      %1298 = vmatpush.msra.mxu0 0.0
      %1299 = vmatpush.msra.mxu0 0.0
      %1300 = vmatpush.msra.mxu0 0.0
      %1301 = vmatpush.msra.mxu0 0.0
      %1302 = vmatpush.msra.mxu0 0.0
      %1303 = vmatpush.msra.mxu0 0.0
      %1304 = vmatpush.msra.mxu0 0.0
      %1305 = vmatpush.msra.mxu0 0.0
      %1306 = vmatpush.msra.mxu0 0.0
      %1307 = vmatpush.msra.mxu0 %v396
      %1308 = vmatmul.f32.gmra.mxu0 %v1290
      %v1309 = vpop.f32.mrf.mxu0
      %v1310 = vadd.f32 0.0, %v1309
      %1311 = vdwg.mxu0
      %v1312 = vmul.f32 %v1078, %v1149
      %v1313 = vmul.f32 %v1085, %v1172
      %v1314 = vmul.f32 %v1092, %v1195
      %v1315 = vmul.f32 %v1099, %v1218
      %v1316 = vmul.f32 %v1106, %v1241
      %v1317 = vmul.f32 %v1113, %v1264
      %v1318 = vmul.f32 %v1120, %v1287
      %v1319 = vmul.f32 %v1127, %v1310
      %v1328 = vrot.slane %v1313, 7
      %vm1329 = vcmask 1041409
      %v1330 = vsel %vm1329, %v1328, %v1312
      %v1331 = vrot.slane %v1314, 6
      %vm1332 = vcmask 1042434
      %v1333 = vsel %vm1332, %v1331, %v1330
      %v1334 = vrot.slane %v1315, 5
      %vm1335 = vcmask 1043459
      %v1336 = vsel %vm1335, %v1334, %v1333
      %v1337 = vrot.slane %v1316, 4
      %vm1338 = vcmask 1044484
      %v1339 = vsel %vm1338, %v1337, %v1336
      %v1340 = vrot.slane %v1317, 3
      %vm1341 = vcmask 1045509
      %v1342 = vsel %vm1341, %v1340, %v1339
      %v1343 = vrot.slane %v1318, 2
      %vm1344 = vcmask 1046534
      %v1345 = vsel %vm1344, %v1343, %v1342
      %v1346 = vrot.slane %v1319, 1
      %vm1347 = vcmask 1047559
      %v1348 = vsel %vm1347, %v1346, %v1345
      %1350 = vadd.xlane.f32.xlu0 %v1348
      %v1351 = vpop.xlane.xlu0 %1350
      %v1352 = vmul.f32 %v1078, %v1078
      %v1353 = vmul.f32 %v1085, %v1085
      %v1354 = vmul.f32 %v1092, %v1092
      %v1355 = vmul.f32 %v1099, %v1099
      %v1356 = vmul.f32 %v1106, %v1106
      %v1357 = vmul.f32 %v1113, %v1113
      %v1358 = vmul.f32 %v1120, %v1120
      %v1359 = vmul.f32 %v1127, %v1127
      %v1368 = vsel %vm1329, %v1353, %v1352
      %v1369 = vsel %vm1332, %v1354, %v1368
      %v1370 = vsel %vm1335, %v1355, %v1369
      %v1371 = vsel %vm1338, %v1356, %v1370
      %v1372 = vsel %vm1341, %v1357, %v1371
      %v1373 = vsel %vm1344, %v1358, %v1372
      %v1374 = vsel %vm1347, %v1359, %v1373
      %1376 = vadd.xlane.f32.xlu0 %v1374
      %v1377 = vpop.xlane.xlu0 %1376
      %v1378 = vrsqrt.pop %v1377
      %v1379 = vmul.f32 %v1378, %v1377
      %v1380 = vmul.f32 %v1379, %v1378
      %v1381 = vmul.f32 0.5, %v1380
      %v1382 = vsub.f32 1.5, %v1381
      %v1383 = vmul.f32 %v1378, %v1382
      %vm1384 = vweird.f32 %v1377
      %vm1385 = vweird.f32 %v1378
      %vm1386 = vmor %vm1384, %vm1385
      %v1387 = vsel %vm1386, %v1378, %v1383
      %v1388 = vmin.f32 %v1387, 1e+08
      %v1389 = vmul.f32 %v1149, %v1149
      %v1390 = vmul.f32 %v1172, %v1172
      %v1391 = vmul.f32 %v1195, %v1195
      %v1392 = vmul.f32 %v1218, %v1218
      %v1393 = vmul.f32 %v1241, %v1241
      %v1394 = vmul.f32 %v1264, %v1264
      %v1395 = vmul.f32 %v1287, %v1287
      %v1396 = vmul.f32 %v1310, %v1310
      %v1405 = vrot.slane %v1390, 7
      %v1406 = vsel %vm1329, %v1405, %v1389
      %v1407 = vrot.slane %v1391, 6
      %v1408 = vsel %vm1332, %v1407, %v1406
      %v1409 = vrot.slane %v1392, 5
      %v1410 = vsel %vm1335, %v1409, %v1408
      %v1411 = vrot.slane %v1393, 4
      %v1412 = vsel %vm1338, %v1411, %v1410
      %v1413 = vrot.slane %v1394, 3
      %v1414 = vsel %vm1341, %v1413, %v1412
      %v1415 = vrot.slane %v1395, 2
      %v1416 = vsel %vm1344, %v1415, %v1414
      %v1417 = vrot.slane %v1396, 1
      %v1418 = vsel %vm1347, %v1417, %v1416
      %1420 = vadd.xlane.f32.xlu0 %v1418
      %v1421 = vpop.xlane.xlu0 %1420
      %v1422 = vrsqrt.pop %v1421
      %v1423 = vmul.f32 %v1422, %v1421
      %v1424 = vmul.f32 %v1423, %v1422
      %v1425 = vmul.f32 0.5, %v1424
      %v1426 = vsub.f32 1.5, %v1425
      %v1427 = vmul.f32 %v1422, %v1426
      %vm1428 = vweird.f32 %v1421
      %vm1429 = vweird.f32 %v1422
      %vm1430 = vmor %vm1428, %vm1429
      %v1431 = vsel %vm1430, %v1422, %v1427
      %v1432 = vmin.f32 %v1431, 1e+08
      %v1433 = vmul.f32 %v1351, %v1388
      %v1434 = vmul.f32 %v1433, %v1432
      %v1435 = vlaneseq
      %v1436 = vshrl.u32 %v1435, 7
      %v1437 = vlaneseq
      %v1438 = vand.u32 %v1437, 127
      %vm1439 = vcmp.eq.s32.totalorder %v1436, %v1438
      %v1440 = vsel %vm1439, 1, 0
      %v1441 = vcvt.s32.f32 %v1440
      %v1442 = vmul.f32 %v1434, %v1441
      %v1443 = vsel %vm679, %v1442, 0.0
      %v1444 = vrot.slane %v1443, 4
      %v1445 = vadd.f32 %v1443, %v1444
      %v1446 = vrot.slane %v1445, 2
      %v1447 = vadd.f32 %v1445, %v1446
      %v1448 = vrot.slane %v1447, 1
      %v1449 = vadd.f32 %v1447, %v1448
      %vm1450 = vcmask 57344
      %1451 = vst.msk [vmem:[%s247] sm:$0x1] %vm1450, %v1449
      %p1452 = scmp.lt.s32.totalorder %s16, 1
      %s1453 = scalar_select %p1452, %s16, 1
      %s1454 = scalar_lea.vmem %s5, %s1453
      // Predicated region
      $region41: #{attentive_pooling_forward.1} parent=39 // pred_check
        %p1455 = pneg %p149
      $region42: #{attentive_pooling_forward.1} parent=39 // pred_check_branch
        %1457 = sbr.rel (%p1455) target = $region44
      $region43: #{attentive_pooling_forward.1} parent=39 // pred_region
        _
      $region44: #{attentive_pooling_forward.1} parent=39 // pred_fallthru
        _
    $region40: #{attentive_pooling_forward.1} parent=5 // pred_fallthru
      _
    %p1458 = scmp.le.s32.totalorder 2, %s11
    // Predicated region
    $region45: #{attentive_pooling_forward.1} parent=5 // pred_check
      %p1459 = pneg %p1458
    $region46: #{attentive_pooling_forward.1} parent=5 // pred_check_branch
      %1461 = sbr.rel (%p1459) target = $region48
    $region47: #{attentive_pooling_forward.1} parent=5 // pred_region
      %s1462 = ssub.s32 %s11, 2
      // Predicated region
      $region49: #{attentive_pooling_forward.1} parent=47 // pred_check
        %p1463 = pneg %p155
      $region50: #{attentive_pooling_forward.1} parent=47 // pred_check_branch
        %1465 = sbr.rel (%p1463) target = $region52
      $region51: #{attentive_pooling_forward.1} parent=47 // pred_region
        %p1466 = scmp.lt.s32.totalorder %s17, 1
        %s1467 = scalar_select %p1466, %s17, 1
        %s1468 = scalar_lea.vmem %s5, %s1467
      $region52: #{attentive_pooling_forward.1} parent=47 // pred_fallthru
        _
    $region48: #{attentive_pooling_forward.1} parent=5 // pred_fallthru
      _
  $region6: #{attentive_pooling_forward.1} parent=0 // loop_footer
    %s15 = sadd.s32 1, %s11
  $region7: #{attentive_pooling_forward.1} parent=0 // loop_footer_branch
    %10 = sbr.rel target = $region3
  $region8: #{attentive_pooling_forward.1} parent=0 // loop_exit
    _

</llo_original>
